<compile_context>
chip_gen: v7x
topology: tpu7x:2x2x1
jax: 0.10.0
libtpu: 0.0.40
codegen_flags: <defaults>
</compile_context>

<pallas_src>
import functools

import jax
import jax.numpy as jnp
from jax.experimental import pallas as pl
from jax.experimental.pallas import tpu as pltpu


# ---------------------------------------------------------------- kernel
def sampler_kernel(lens_ref,                         # SMEM (B,) int32
                   x_ref,                            # (C, T + 4*pad) f32, zero borders
                   w1_ref, b1_ref, g1_ref, be1_ref,  # conv1 (bf16 stacked), ln1
                   w2_ref, b2_ref, g2_ref, be2_ref,  # conv2 (bf16 stacked), ln2
                   wp_ref, bp_ref,                   # fused proj (2C, C) bf16, (2C, 1)
                   mu_ref, logs_ref,                 # (C, T) f32 outputs
                   *, K, T, C, eps):
    b = pl.program_id(0)
    pad = K // 2
    W1 = T + 2 * pad                    # conv1 output frame: logical t in [-pad, T+pad)
    length = lens_ref[b]

    # Masks (built from one SMEM scalar; time index lives on lanes).
    j1 = jax.lax.broadcasted_iota(jnp.int32, (1, W1), 1)
    keep1 = ((j1 >= pad) & (j1 < pad + length)).astype(jnp.float32)   # masked_fill
    in_frame1 = ((j1 >= pad) & (j1 < pad + T)).astype(jnp.float32)    # conv2 zero-pad
    j2 = jax.lax.broadcasted_iota(jnp.int32, (1, T), 1)
    keep2 = (j2 < length).astype(jnp.float32)

    def conv_relu(x_frame, w_ref, b_ref, width):
        # x_frame: (C, width + 2*pad), zero outside the valid signal.
        # im2col: K static lane-slices stacked along sublanes (aligned, C % 8 == 0).
        cols = jnp.concatenate([x_frame[:, k:k + width] for k in range(K)], axis=0)
        h = jnp.dot(w_ref[...], cols.astype(jnp.bfloat16),
                    preferred_element_type=jnp.float32) + b_ref[...]
        return jnp.maximum(h, 0.0)      # ReLU; dropout = identity (inference)

    def layernorm_c(y, g_ref, be_ref):
        # LayerNormT: normalize over channels (sublane axis here).
        m = jnp.mean(y, axis=0, keepdims=True)
        v = jnp.mean((y - m) ** 2, axis=0, keepdims=True)
        return (y - m) * jax.lax.rsqrt(v + eps) * g_ref[...] + be_ref[...]

    x0 = x_ref[...]                                          # (C, T + 4*pad)

    # conv1 -> ReLU -> masked_fill -> residual -> LayerNorm   (frame width W1)
    h1 = conv_relu(x0, w1_ref, b1_ref, W1) * keep1
    x1 = layernorm_c(x0[:, pad:pad + W1] + h1, g1_ref, be1_ref)

    # conv2: its zero padding = columns outside logical [0, T) of frame1.
    h2 = conv_relu(x1 * in_frame1, w2_ref, b2_ref, T) * keep2
    x2 = layernorm_c(x1[:, pad:pad + T] + h2, g2_ref, be2_ref)

    # fused 1x1 projections: (2C, C) @ (C, T) -> (2C, T); split along sublanes.
    p = jnp.dot(wp_ref[...], x2.astype(jnp.bfloat16),
                preferred_element_type=jnp.float32) + bp_ref[...]
    p = p * keep2
    mu_ref[...] = p[:C, :].astype(mu_ref.dtype)
    logs_ref[...] = p[C:, :].astype(logs_ref.dtype)


# ---------------------------------------------------------------- wrapper
def sampler_forward(x_btc, lengths, params, *, K, eps=1e-4):
    """x_btc: (B, T, C) f32; lengths: (B,) valid frame counts.

    Returns (mu, logs) as (B, C, T), matching the PyTorch module.
    """
    B, T, C = x_btc.shape
    assert K % 2 == 1, "PyTorch padding=K//2 preserves length only for odd K"
    pad = K // 2
    lengths = lengths.astype(jnp.int32)
    (w1s, b1, g1, be1, w2s, b2, g2, be2, wp, bp) = params

    # Module's first op (x.transpose(-1, -2)) plus zero time-padding so the
    # kernel's conv taps are plain lane slices (no in-kernel pad/concat).
    x_nct = jnp.transpose(x_btc, (0, 2, 1))                    # (B, C, T)
    x_pad = jnp.pad(x_nct, ((0, 0), (0, 0), (2 * pad, 2 * pad)))
    W0 = T + 4 * pad

    kernel = functools.partial(sampler_kernel, K=K, T=T, C=C, eps=eps)

    def rep(shape):
        n = len(shape)
        return pl.BlockSpec(shape, lambda b, lens, _n=n: (0,) * _n)

    grid_spec = pltpu.PrefetchScalarGridSpec(
        num_scalar_prefetch=1,          # lengths -> SMEM
        grid=(B,),
        in_specs=[
            pl.BlockSpec((None, C, W0), lambda b, lens: (b, 0, 0)),   # x (padded)
            rep((C, K * C)), rep((C, 1)), rep((C, 1)), rep((C, 1)),   # conv1 / ln1
            rep((C, K * C)), rep((C, 1)), rep((C, 1)), rep((C, 1)),   # conv2 / ln2
            rep((2 * C, C)), rep((2 * C, 1)),                         # fused proj
        ],
        out_specs=(pl.BlockSpec((None, C, T), lambda b, lens: (b, 0, 0)),
                   pl.BlockSpec((None, C, T), lambda b, lens: (b, 0, 0))),
    )

    mu, logs = pl.pallas_call(
        kernel,
        out_shape=(jax.ShapeDtypeStruct((B, C, T), jnp.float32),
                   jax.ShapeDtypeStruct((B, C, T), jnp.float32)),
        grid_spec=grid_spec,
        compiler_params=pltpu.CompilerParams(
            dimension_semantics=("parallel",)),
    )(lengths, x_pad, w1s, b1, g1, be1, w2s, b2, g2, be2, wp, bp)
    return mu, logs


def prepare_params(pt_params):
    """PyTorch-layout weights -> kernel layout (stacked taps, fused proj, bf16)."""
    (w1, b1, g1, be1, w2, b2, g2, be2, wm, bm, wl, bl) = pt_params
    C_out, C_in, K = w1.shape

    def stack_conv(w):   # (C_out, C_in, K) -> (C_out, K*C_in), columns tap-major
        return jnp.transpose(w, (0, 2, 1)).reshape(C_out, K * C_in).astype(jnp.bfloat16)

    def col(v):
        return v.reshape(-1, 1).astype(jnp.float32)

    wp = jnp.concatenate([wm[:, :, 0], wl[:, :, 0]], axis=0).astype(jnp.bfloat16)
    bp = jnp.concatenate([bm, bl], axis=0).reshape(-1, 1).astype(jnp.float32)
    return (stack_conv(w1), col(b1), col(g1), col(be1),
            stack_conv(w2), col(b2), col(g2), col(be2),
            wp, bp)


# ---------------------------------------------------------------- pure-JAX ref
def sampler_ref(x_btc, x_mask, pt_params, *, K, eps=1e-4):
    """f32 mirror of the PyTorch module (x_mask: True = masked position)."""
    (w1, b1, g1, be1, w2, b2, g2, be2, wm, bm, wl, bl) = pt_params
    keep = (~x_mask).astype(jnp.float32)[:, None, :]          # (B, 1, T)
    x = jnp.transpose(x_btc, (0, 2, 1))                       # (B, C, T)
    pad = K // 2
    T = x.shape[-1]

    def conv(xin, w, b):
        xp = jnp.pad(xin, ((0, 0), (0, 0), (pad, pad)))
        acc = sum(jnp.einsum('bct,oc->bot', xp[:, :, k:k + T], w[:, :, k])
                  for k in range(K))
        return acc + b[None, :, None]

    def ln(xin, g, be):
        m = jnp.mean(xin, 1, keepdims=True)
        v = jnp.mean((xin - m) ** 2, 1, keepdims=True)
        return (xin - m) * jax.lax.rsqrt(v + eps) * g[None, :, None] + be[None, :, None]

    h = jnp.maximum(conv(x, w1, b1), 0.0) * keep
    x = ln(x + h, g1, be1)
    h = jnp.maximum(conv(x, w2, b2), 0.0) * keep
    x = ln(x + h, g2, be2)
    mu = (jnp.einsum('bct,oc->bot', x, wm[:, :, 0]) + bm[None, :, None]) * keep
    logs = (jnp.einsum('bct,oc->bot', x, wl[:, :, 0]) + bl[None, :, None]) * keep
    return mu, logs


# ---------------------------------------------------------------- main
if __name__ == "__main__":
    B, T, C, K = 2, 16, 32, 5       # n_mels = 32, flowdecoder kernel_size = 5
    EPS = 1e-4                      # LayerNormT eps

    key = jax.random.PRNGKey(0)
    ks = jax.random.split(key, 13)
    s = 0.1
    # PyTorch layouts: Conv1d weight (C_out, C_in, K), bias (C,), LN params (C,).
    w1 = jax.random.normal(ks[0], (C, C, K), jnp.float32) * s
    b1 = jax.random.normal(ks[1], (C,), jnp.float32) * s
    w2 = jax.random.normal(ks[2], (C, C, K), jnp.float32) * s
    b2 = jax.random.normal(ks[3], (C,), jnp.float32) * s
    wm = jax.random.normal(ks[4], (C, C, 1), jnp.float32) * s
    bm = jax.random.normal(ks[5], (C,), jnp.float32) * s
    wl = jax.random.normal(ks[6], (C, C, 1), jnp.float32) * s
    bl = jax.random.normal(ks[7], (C,), jnp.float32) * s
    g1 = 1.0 + jax.random.normal(ks[8], (C,), jnp.float32) * s
    be1 = jax.random.normal(ks[9], (C,), jnp.float32) * s
    g2 = 1.0 + jax.random.normal(ks[10], (C,), jnp.float32) * s
    be2 = jax.random.normal(ks[11], (C,), jnp.float32) * s
    pt_params = (w1, b1, g1, be1, w2, b2, g2, be2, wm, bm, wl, bl)

    x = jax.random.normal(ks[12], (B, T, C), jnp.float32)
    lengths = jnp.array([T, 10], dtype=jnp.int32)
    x_mask = jnp.arange(T)[None, :] >= lengths[:, None]       # True = padded frame

    params = prepare_params(pt_params)
    mu, logs = sampler_forward(x, lengths, params, K=K, eps=EPS)
    jax.block_until_ready((mu, logs))

    mu_ref, logs_ref = sampler_ref(x, x_mask, pt_params, K=K, eps=EPS)
    assert mu.shape == (B, C, T) and logs.shape == (B, C, T)
    assert jnp.allclose(mu, mu_ref, rtol=5e-2, atol=5e-2), \
        float(jnp.max(jnp.abs(mu - mu_ref)))
    assert jnp.allclose(logs, logs_ref, rtol=5e-2, atol=5e-2), \
        float(jnp.max(jnp.abs(logs - logs_ref)))

    # TODO(synk): Dropout is modeled as inference-mode identity (no RNG mask).
    print("KERNEL_OK")
</pallas_src>

<mosaic_0001>
module attributes {stable_mosaic.version = 11 : i64} {
  func.func @sampler_kernel(%arg0: i32, %arg1: memref<2xi32, #tpu.memory_space<smem>>, %arg2: memref<1x32x24xf32, #tpu.memory_space<vmem>>, %arg3: memref<32x160xbf16, #tpu.memory_space<vmem>>, %arg4: memref<32x1xf32, #tpu.memory_space<vmem>>, %arg5: memref<32x1xf32, #tpu.memory_space<vmem>>, %arg6: memref<32x1xf32, #tpu.memory_space<vmem>>, %arg7: memref<32x160xbf16, #tpu.memory_space<vmem>>, %arg8: memref<32x1xf32, #tpu.memory_space<vmem>>, %arg9: memref<32x1xf32, #tpu.memory_space<vmem>>, %arg10: memref<32x1xf32, #tpu.memory_space<vmem>>, %arg11: memref<64x32xbf16, #tpu.memory_space<vmem>>, %arg12: memref<64x1xf32, #tpu.memory_space<vmem>>, %arg13: memref<1x32x16xf32, #tpu.memory_space<vmem>>, %arg14: memref<1x32x16xf32, #tpu.memory_space<vmem>>) attributes {dimension_semantics = [#tpu.dimension_semantics<parallel>], iteration_bounds = array<i64: 2>, scalar_prefetch = 1 : i64, scratch_operands = 0 : i64, tpu.core_type = #tpu.core_type<tc>, window_params = [{transform_indices = @transform_0, window_bounds = array<i64: 1, 32, 24>}, {pipeline_mode = #tpu.pipeline_mode<synchronous>, transform_indices = @transform_1, window_bounds = array<i64: 32, 160>}, {pipeline_mode = #tpu.pipeline_mode<synchronous>, transform_indices = @transform_2, window_bounds = array<i64: 32, 1>}, {pipeline_mode = #tpu.pipeline_mode<synchronous>, transform_indices = @transform_3, window_bounds = array<i64: 32, 1>}, {pipeline_mode = #tpu.pipeline_mode<synchronous>, transform_indices = @transform_4, window_bounds = array<i64: 32, 1>}, {pipeline_mode = #tpu.pipeline_mode<synchronous>, transform_indices = @transform_5, window_bounds = array<i64: 32, 160>}, {pipeline_mode = #tpu.pipeline_mode<synchronous>, transform_indices = @transform_6, window_bounds = array<i64: 32, 1>}, {pipeline_mode = #tpu.pipeline_mode<synchronous>, transform_indices = @transform_7, window_bounds = array<i64: 32, 1>}, {pipeline_mode = #tpu.pipeline_mode<synchronous>, transform_indices = @transform_8, window_bounds = array<i64: 32, 1>}, {pipeline_mode = #tpu.pipeline_mode<synchronous>, transform_indices = @transform_9, window_bounds = array<i64: 64, 32>}, {pipeline_mode = #tpu.pipeline_mode<synchronous>, transform_indices = @transform_10, window_bounds = array<i64: 64, 1>}, {transform_indices = @transform_11, window_bounds = array<i64: 1, 32, 16>}, {transform_indices = @transform_12, window_bounds = array<i64: 1, 32, 16>}]} {
    %0 = arith.index_cast %arg0 : i32 to index
    %1 = memref.load %arg1[%0] : memref<2xi32, #tpu.memory_space<smem>>
    %2 = tpu.iota {dimensions = array<i32: 1>} : vector<1x20xi32>
    %c2_i32 = arith.constant 2 : i32
    %3 = vector.broadcast %c2_i32 : i32 to vector<1x20xi32>
    %4 = arith.cmpi sge, %2, %3 : vector<1x20xi32>
    %c2_i32_0 = arith.constant 2 : i32
    %5 = arith.addi %c2_i32_0, %1 : i32
    %6 = vector.broadcast %5 : i32 to vector<1x20xi32>
    %7 = arith.cmpi slt, %2, %6 : vector<1x20xi32>
    %8 = arith.andi %4, %7 : vector<1x20xi1>
    %9 = arith.extui %8 : vector<1x20xi1> to vector<1x20xi32>
    %10 = arith.sitofp %9 : vector<1x20xi32> to vector<1x20xf32>
    %c2_i32_1 = arith.constant 2 : i32
    %11 = vector.broadcast %c2_i32_1 : i32 to vector<1x20xi32>
    %12 = arith.cmpi sge, %2, %11 : vector<1x20xi32>
    %c18_i32 = arith.constant 18 : i32
    %13 = vector.broadcast %c18_i32 : i32 to vector<1x20xi32>
    %14 = arith.cmpi slt, %2, %13 : vector<1x20xi32>
    %15 = arith.andi %12, %14 : vector<1x20xi1>
    %16 = arith.extui %15 : vector<1x20xi1> to vector<1x20xi32>
    %17 = arith.sitofp %16 : vector<1x20xi32> to vector<1x20xf32>
    %18 = tpu.iota {dimensions = array<i32: 1>} : vector<1x16xi32>
    %19 = vector.broadcast %1 : i32 to vector<1x16xi32>
    %20 = arith.cmpi slt, %18, %19 : vector<1x16xi32>
    %21 = arith.extui %20 : vector<1x16xi1> to vector<1x16xi32>
    %22 = arith.sitofp %21 : vector<1x16xi32> to vector<1x16xf32>
    %c0 = arith.constant 0 : index
    %c0_2 = arith.constant 0 : index
    %c0_3 = arith.constant 0 : index
    %23 = vector.load %arg2[%c0, %c0_2, %c0_3] : memref<1x32x24xf32, #tpu.memory_space<vmem>>, vector<1x32x24xf32>
    %24 = vector.shape_cast %23 : vector<1x32x24xf32> to vector<32x24xf32>
    %25 = vector.extract_strided_slice %24 {offsets = [0, 0], sizes = [32, 20], strides = [1, 1]} : vector<32x24xf32> to vector<32x20xf32>
    %26 = vector.extract_strided_slice %24 {offsets = [0, 1], sizes = [32, 20], strides = [1, 1]} : vector<32x24xf32> to vector<32x20xf32>
    %27 = vector.extract_strided_slice %24 {offsets = [0, 2], sizes = [32, 20], strides = [1, 1]} : vector<32x24xf32> to vector<32x20xf32>
    %28 = vector.extract_strided_slice %24 {offsets = [0, 3], sizes = [32, 20], strides = [1, 1]} : vector<32x24xf32> to vector<32x20xf32>
    %29 = vector.extract_strided_slice %24 {offsets = [0, 4], sizes = [32, 20], strides = [1, 1]} : vector<32x24xf32> to vector<32x20xf32>
    %30 = tpu.concatenate %25, %26, %27, %28, %29 in 0 : vector<32x20xf32>, vector<32x20xf32>, vector<32x20xf32>, vector<32x20xf32>, vector<32x20xf32> -> vector<160x20xf32>
    %c0_4 = arith.constant 0 : index
    %c0_5 = arith.constant 0 : index
    %31 = vector.load %arg3[%c0_4, %c0_5] : memref<32x160xbf16, #tpu.memory_space<vmem>>, vector<32x160xbf16>
    %32 = arith.truncf %30 : vector<160x20xf32> to vector<160x20xbf16>
    %cst = arith.constant dense<0.000000e+00> : vector<32x20xf32>
    %33 = tpu.matmul %31, %32, %cst {dimension_numbers = #tpu.dot_dimension_numbers<[1], [0], [0], [1], [0, 0, 1, 1], [], []>} : vector<32x160xbf16>, vector<160x20xbf16>, vector<32x20xf32> -> vector<32x20xf32>
    %c0_6 = arith.constant 0 : index
    %c0_7 = arith.constant 0 : index
    %34 = vector.load %arg4[%c0_6, %c0_7] : memref<32x1xf32, #tpu.memory_space<vmem>>, vector<32x1xf32>
    %35 = vector.broadcast %34 : vector<32x1xf32> to vector<32x20xf32>
    %36 = arith.addf %33, %35 : vector<32x20xf32>
    %cst_8 = arith.constant 0.000000e+00 : f32
    %37 = vector.broadcast %cst_8 : f32 to vector<32x20xf32>
    %38 = arith.maximumf %36, %37 : vector<32x20xf32>
    %39 = vector.broadcast %10 : vector<1x20xf32> to vector<32x20xf32>
    %40 = arith.mulf %38, %39 : vector<32x20xf32>
    %41 = vector.extract_strided_slice %24 {offsets = [0, 2], sizes = [32, 20], strides = [1, 1]} : vector<32x24xf32> to vector<32x20xf32>
    %42 = arith.addf %41, %40 : vector<32x20xf32>
    %cst_9 = arith.constant dense<0.000000e+00> : vector<20xf32>
    %43 = vector.multi_reduction <add>, %42, %cst_9 [0] : vector<32x20xf32> to vector<20xf32>
    %44 = vector.shape_cast %43 : vector<20xf32> to vector<1x20xf32>
    %cst_10 = arith.constant 3.200000e+01 : f32
    %45 = vector.broadcast %cst_10 : f32 to vector<1x20xf32>
    %46 = arith.divf %44, %45 : vector<1x20xf32>
    %47 = vector.broadcast %46 : vector<1x20xf32> to vector<32x20xf32>
    %48 = arith.subf %42, %47 : vector<32x20xf32>
    %49 = arith.mulf %48, %48 : vector<32x20xf32>
    %cst_11 = arith.constant dense<0.000000e+00> : vector<20xf32>
    %50 = vector.multi_reduction <add>, %49, %cst_11 [0] : vector<32x20xf32> to vector<20xf32>
    %51 = vector.shape_cast %50 : vector<20xf32> to vector<1x20xf32>
    %cst_12 = arith.constant 3.200000e+01 : f32
    %52 = vector.broadcast %cst_12 : f32 to vector<1x20xf32>
    %53 = arith.divf %51, %52 : vector<1x20xf32>
    %54 = vector.broadcast %46 : vector<1x20xf32> to vector<32x20xf32>
    %55 = arith.subf %42, %54 : vector<32x20xf32>
    %cst_13 = arith.constant 9.99999974E-5 : f32
    %56 = vector.broadcast %cst_13 : f32 to vector<1x20xf32>
    %57 = arith.addf %53, %56 : vector<1x20xf32>
    %58 = math.rsqrt %57 : vector<1x20xf32>
    %59 = vector.broadcast %58 : vector<1x20xf32> to vector<32x20xf32>
    %60 = arith.mulf %55, %59 : vector<32x20xf32>
    %c0_14 = arith.constant 0 : index
    %c0_15 = arith.constant 0 : index
    %61 = vector.load %arg5[%c0_14, %c0_15] : memref<32x1xf32, #tpu.memory_space<vmem>>, vector<32x1xf32>
    %62 = vector.broadcast %61 : vector<32x1xf32> to vector<32x20xf32>
    %63 = arith.mulf %60, %62 : vector<32x20xf32>
    %c0_16 = arith.constant 0 : index
    %c0_17 = arith.constant 0 : index
    %64 = vector.load %arg6[%c0_16, %c0_17] : memref<32x1xf32, #tpu.memory_space<vmem>>, vector<32x1xf32>
    %65 = vector.broadcast %64 : vector<32x1xf32> to vector<32x20xf32>
    %66 = arith.addf %63, %65 : vector<32x20xf32>
    %67 = vector.broadcast %17 : vector<1x20xf32> to vector<32x20xf32>
    %68 = arith.mulf %66, %67 : vector<32x20xf32>
    %69 = vector.extract_strided_slice %68 {offsets = [0, 0], sizes = [32, 16], strides = [1, 1]} : vector<32x20xf32> to vector<32x16xf32>
    %70 = vector.extract_strided_slice %68 {offsets = [0, 1], sizes = [32, 16], strides = [1, 1]} : vector<32x20xf32> to vector<32x16xf32>
    %71 = vector.extract_strided_slice %68 {offsets = [0, 2], sizes = [32, 16], strides = [1, 1]} : vector<32x20xf32> to vector<32x16xf32>
    %72 = vector.extract_strided_slice %68 {offsets = [0, 3], sizes = [32, 16], strides = [1, 1]} : vector<32x20xf32> to vector<32x16xf32>
    %73 = vector.extract_strided_slice %68 {offsets = [0, 4], sizes = [32, 16], strides = [1, 1]} : vector<32x20xf32> to vector<32x16xf32>
    %74 = tpu.concatenate %69, %70, %71, %72, %73 in 0 : vector<32x16xf32>, vector<32x16xf32>, vector<32x16xf32>, vector<32x16xf32>, vector<32x16xf32> -> vector<160x16xf32>
    %c0_18 = arith.constant 0 : index
    %c0_19 = arith.constant 0 : index
    %75 = vector.load %arg7[%c0_18, %c0_19] : memref<32x160xbf16, #tpu.memory_space<vmem>>, vector<32x160xbf16>
    %76 = arith.truncf %74 : vector<160x16xf32> to vector<160x16xbf16>
    %cst_20 = arith.constant dense<0.000000e+00> : vector<32x16xf32>
    %77 = tpu.matmul %75, %76, %cst_20 {dimension_numbers = #tpu.dot_dimension_numbers<[1], [0], [0], [1], [0, 0, 1, 1], [], []>} : vector<32x160xbf16>, vector<160x16xbf16>, vector<32x16xf32> -> vector<32x16xf32>
    %c0_21 = arith.constant 0 : index
    %c0_22 = arith.constant 0 : index
    %78 = vector.load %arg8[%c0_21, %c0_22] : memref<32x1xf32, #tpu.memory_space<vmem>>, vector<32x1xf32>
    %79 = vector.broadcast %78 : vector<32x1xf32> to vector<32x16xf32>
    %80 = arith.addf %77, %79 : vector<32x16xf32>
    %cst_23 = arith.constant 0.000000e+00 : f32
    %81 = vector.broadcast %cst_23 : f32 to vector<32x16xf32>
    %82 = arith.maximumf %80, %81 : vector<32x16xf32>
    %83 = vector.broadcast %22 : vector<1x16xf32> to vector<32x16xf32>
    %84 = arith.mulf %82, %83 : vector<32x16xf32>
    %85 = vector.extract_strided_slice %66 {offsets = [0, 2], sizes = [32, 16], strides = [1, 1]} : vector<32x20xf32> to vector<32x16xf32>
    %86 = arith.addf %85, %84 : vector<32x16xf32>
    %cst_24 = arith.constant dense<0.000000e+00> : vector<16xf32>
    %87 = vector.multi_reduction <add>, %86, %cst_24 [0] : vector<32x16xf32> to vector<16xf32>
    %88 = vector.shape_cast %87 : vector<16xf32> to vector<1x16xf32>
    %cst_25 = arith.constant 3.200000e+01 : f32
    %89 = vector.broadcast %cst_25 : f32 to vector<1x16xf32>
    %90 = arith.divf %88, %89 : vector<1x16xf32>
    %91 = vector.broadcast %90 : vector<1x16xf32> to vector<32x16xf32>
    %92 = arith.subf %86, %91 : vector<32x16xf32>
    %93 = arith.mulf %92, %92 : vector<32x16xf32>
    %cst_26 = arith.constant dense<0.000000e+00> : vector<16xf32>
    %94 = vector.multi_reduction <add>, %93, %cst_26 [0] : vector<32x16xf32> to vector<16xf32>
    %95 = vector.shape_cast %94 : vector<16xf32> to vector<1x16xf32>
    %cst_27 = arith.constant 3.200000e+01 : f32
    %96 = vector.broadcast %cst_27 : f32 to vector<1x16xf32>
    %97 = arith.divf %95, %96 : vector<1x16xf32>
    %98 = vector.broadcast %90 : vector<1x16xf32> to vector<32x16xf32>
    %99 = arith.subf %86, %98 : vector<32x16xf32>
    %cst_28 = arith.constant 9.99999974E-5 : f32
    %100 = vector.broadcast %cst_28 : f32 to vector<1x16xf32>
    %101 = arith.addf %97, %100 : vector<1x16xf32>
    %102 = math.rsqrt %101 : vector<1x16xf32>
    %103 = vector.broadcast %102 : vector<1x16xf32> to vector<32x16xf32>
    %104 = arith.mulf %99, %103 : vector<32x16xf32>
    %c0_29 = arith.constant 0 : index
    %c0_30 = arith.constant 0 : index
    %105 = vector.load %arg9[%c0_29, %c0_30] : memref<32x1xf32, #tpu.memory_space<vmem>>, vector<32x1xf32>
    %106 = vector.broadcast %105 : vector<32x1xf32> to vector<32x16xf32>
    %107 = arith.mulf %104, %106 : vector<32x16xf32>
    %c0_31 = arith.constant 0 : index
    %c0_32 = arith.constant 0 : index
    %108 = vector.load %arg10[%c0_31, %c0_32] : memref<32x1xf32, #tpu.memory_space<vmem>>, vector<32x1xf32>
    %109 = vector.broadcast %108 : vector<32x1xf32> to vector<32x16xf32>
    %110 = arith.addf %107, %109 : vector<32x16xf32>
    %c0_33 = arith.constant 0 : index
    %c0_34 = arith.constant 0 : index
    %111 = vector.load %arg11[%c0_33, %c0_34] : memref<64x32xbf16, #tpu.memory_space<vmem>>, vector<64x32xbf16>
    %112 = arith.truncf %110 : vector<32x16xf32> to vector<32x16xbf16>
    %cst_35 = arith.constant dense<0.000000e+00> : vector<64x16xf32>
    %113 = tpu.matmul %111, %112, %cst_35 {dimension_numbers = #tpu.dot_dimension_numbers<[1], [0], [0], [1], [0, 0, 1, 1], [], []>} : vector<64x32xbf16>, vector<32x16xbf16>, vector<64x16xf32> -> vector<64x16xf32>
    %c0_36 = arith.constant 0 : index
    %c0_37 = arith.constant 0 : index
    %114 = vector.load %arg12[%c0_36, %c0_37] : memref<64x1xf32, #tpu.memory_space<vmem>>, vector<64x1xf32>
    %115 = vector.broadcast %114 : vector<64x1xf32> to vector<64x16xf32>
    %116 = arith.addf %113, %115 : vector<64x16xf32>
    %117 = vector.broadcast %22 : vector<1x16xf32> to vector<64x16xf32>
    %118 = arith.mulf %116, %117 : vector<64x16xf32>
    %119 = vector.extract_strided_slice %118 {offsets = [0, 0], sizes = [32, 16], strides = [1, 1]} : vector<64x16xf32> to vector<32x16xf32>
    %c0_38 = arith.constant 0 : index
    %c0_39 = arith.constant 0 : index
    %c0_40 = arith.constant 0 : index
    %120 = vector.load %arg13[%c0_38, %c0_39, %c0_40] : memref<1x32x16xf32, #tpu.memory_space<vmem>>, vector<1x32x16xf32>
    %121 = vector.shape_cast %120 : vector<1x32x16xf32> to vector<32x16xf32>
    %122 = vector.shape_cast %119 : vector<32x16xf32> to vector<1x32x16xf32>
    tpu.vector_store %arg13[%c0_38, %c0_39, %c0_40], %122 {strides = array<i32>} : memref<1x32x16xf32, #tpu.memory_space<vmem>>, vector<1x32x16xf32>,
    %123 = vector.extract_strided_slice %118 {offsets = [32, 0], sizes = [32, 16], strides = [1, 1]} : vector<64x16xf32> to vector<32x16xf32>
    %c0_41 = arith.constant 0 : index
    %c0_42 = arith.constant 0 : index
    %c0_43 = arith.constant 0 : index
    %124 = vector.load %arg14[%c0_41, %c0_42, %c0_43] : memref<1x32x16xf32, #tpu.memory_space<vmem>>, vector<1x32x16xf32>
    %125 = vector.shape_cast %124 : vector<1x32x16xf32> to vector<32x16xf32>
    %126 = vector.shape_cast %123 : vector<32x16xf32> to vector<1x32x16xf32>
    tpu.vector_store %arg14[%c0_41, %c0_42, %c0_43], %126 {strides = array<i32>} : memref<1x32x16xf32, #tpu.memory_space<vmem>>, vector<1x32x16xf32>,
    return
  }
  func.func @transform_0(%arg0: i32, %arg1: memref<2xi32, #tpu.memory_space<smem>>) -> (i32, i32, i32) {
    %c0_i32 = arith.constant 0 : i32
    %c0_i32_0 = arith.constant 0 : i32
    %c0_i32_1 = arith.constant 0 : i32
    return %arg0, %c0_i32, %c0_i32_0 : i32, i32, i32
  }
  func.func @transform_1(%arg0: i32, %arg1: memref<2xi32, #tpu.memory_space<smem>>) -> (i32, i32) {
    %c0_i32 = arith.constant 0 : i32
    %c0_i32_0 = arith.constant 0 : i32
    %c0_i32_1 = arith.constant 0 : i32
    return %c0_i32, %c0_i32_0 : i32, i32
  }
  func.func @transform_2(%arg0: i32, %arg1: memref<2xi32, #tpu.memory_space<smem>>) -> (i32, i32) {
    %c0_i32 = arith.constant 0 : i32
    %c0_i32_0 = arith.constant 0 : i32
    %c0_i32_1 = arith.constant 0 : i32
    return %c0_i32, %c0_i32_0 : i32, i32
  }
  func.func @transform_3(%arg0: i32, %arg1: memref<2xi32, #tpu.memory_space<smem>>) -> (i32, i32) {
    %c0_i32 = arith.constant 0 : i32
    %c0_i32_0 = arith.constant 0 : i32
    %c0_i32_1 = arith.constant 0 : i32
    return %c0_i32, %c0_i32_0 : i32, i32
  }
  func.func @transform_4(%arg0: i32, %arg1: memref<2xi32, #tpu.memory_space<smem>>) -> (i32, i32) {
    %c0_i32 = arith.constant 0 : i32
    %c0_i32_0 = arith.constant 0 : i32
    %c0_i32_1 = arith.constant 0 : i32
    return %c0_i32, %c0_i32_0 : i32, i32
  }
  func.func @transform_5(%arg0: i32, %arg1: memref<2xi32, #tpu.memory_space<smem>>) -> (i32, i32) {
    %c0_i32 = arith.constant 0 : i32
    %c0_i32_0 = arith.constant 0 : i32
    %c0_i32_1 = arith.constant 0 : i32
    return %c0_i32, %c0_i32_0 : i32, i32
  }
  func.func @transform_6(%arg0: i32, %arg1: memref<2xi32, #tpu.memory_space<smem>>) -> (i32, i32) {
    %c0_i32 = arith.constant 0 : i32
    %c0_i32_0 = arith.constant 0 : i32
    %c0_i32_1 = arith.constant 0 : i32
    return %c0_i32, %c0_i32_0 : i32, i32
  }
  func.func @transform_7(%arg0: i32, %arg1: memref<2xi32, #tpu.memory_space<smem>>) -> (i32, i32) {
    %c0_i32 = arith.constant 0 : i32
    %c0_i32_0 = arith.constant 0 : i32
    %c0_i32_1 = arith.constant 0 : i32
    return %c0_i32, %c0_i32_0 : i32, i32
  }
  func.func @transform_8(%arg0: i32, %arg1: memref<2xi32, #tpu.memory_space<smem>>) -> (i32, i32) {
    %c0_i32 = arith.constant 0 : i32
    %c0_i32_0 = arith.constant 0 : i32
    %c0_i32_1 = arith.constant 0 : i32
    return %c0_i32, %c0_i32_0 : i32, i32
  }
  func.func @transform_9(%arg0: i32, %arg1: memref<2xi32, #tpu.memory_space<smem>>) -> (i32, i32) {
    %c0_i32 = arith.constant 0 : i32
    %c0_i32_0 = arith.constant 0 : i32
    %c0_i32_1 = arith.constant 0 : i32
    return %c0_i32, %c0_i32_0 : i32, i32
  }
  func.func @transform_10(%arg0: i32, %arg1: memref<2xi32, #tpu.memory_space<smem>>) -> (i32, i32) {
    %c0_i32 = arith.constant 0 : i32
    %c0_i32_0 = arith.constant 0 : i32
    %c0_i32_1 = arith.constant 0 : i32
    return %c0_i32, %c0_i32_0 : i32, i32
  }
  func.func @transform_11(%arg0: i32, %arg1: memref<2xi32, #tpu.memory_space<smem>>) -> (i32, i32, i32) {
    %c0_i32 = arith.constant 0 : i32
    %c0_i32_0 = arith.constant 0 : i32
    %c0_i32_1 = arith.constant 0 : i32
    return %arg0, %c0_i32, %c0_i32_0 : i32, i32, i32
  }
  func.func @transform_12(%arg0: i32, %arg1: memref<2xi32, #tpu.memory_space<smem>>) -> (i32, i32, i32) {
    %c0_i32 = arith.constant 0 : i32
    %c0_i32_0 = arith.constant 0 : i32
    %c0_i32_1 = arith.constant 0 : i32
    return %arg0, %c0_i32, %c0_i32_0 : i32, i32, i32
  }
}

</mosaic_0001>

<llo_original>
// kernel: tpu_custom_call.1
$region0: #{tpu_custom_call.1}
  #allocation0 [shape = 'u32[]', space=smem, size = 0x4, offset = 0x4, fixed_abs, tag = 'smem constant byte address 0x4 - core index']
  #allocation1 [shape = 'u32[144,128]{1,0:T(1,128)}', space=vmem, size = 0x12000, scoped, tag = 'internal scratch']
  #allocation2 [shape = 's32[1]{0}', space=sflag, size = 0x4, scoped, tag = 'scoped memory for tpu_custom_call.1']
  #allocation3 [shape = 'u8[512]{0}', space=smem, size = 0x200, scoped, tag = 'prefetched SMEM operand 0']
  %s0 = inlined_call_operand.vmem [shape: s32[2], index: 0, kind: input, shape index: {}]
  %s1 = inlined_call_operand.vmem [shape: f32[2,32,24], index: 1, kind: input, shape index: {}]
  %s2 = inlined_call_operand.vmem [shape: bf16[32,160], index: 2, kind: input, shape index: {}]
  %s3 = inlined_call_operand.vmem [shape: f32[32,1], index: 3, kind: input, shape index: {}]
  %s4 = inlined_call_operand.vmem [shape: f32[32,1], index: 4, kind: input, shape index: {}]
  %s5 = inlined_call_operand.vmem [shape: f32[32,1], index: 5, kind: input, shape index: {}]
  %s6 = inlined_call_operand.vmem [shape: bf16[32,160], index: 6, kind: input, shape index: {}]
  %s7 = inlined_call_operand.vmem [shape: f32[32,1], index: 7, kind: input, shape index: {}]
  %s8 = inlined_call_operand.vmem [shape: f32[32,1], index: 8, kind: input, shape index: {}]
  %s9 = inlined_call_operand.vmem [shape: f32[32,1], index: 9, kind: input, shape index: {}]
  %s10 = inlined_call_operand.vmem [shape: bf16[64,32], index: 10, kind: input, shape index: {}]
  %s11 = inlined_call_operand.vmem [shape: f32[64,1], index: 11, kind: input, shape index: {}]
  %s12 = inlined_call_operand.vmem [shape: f32[2,32,16], index: 12, kind: output, shape index: {0}]
  %s13 = inlined_call_operand.vmem [shape: f32[2,32,16], index: 13, kind: output, shape index: {1}]
  %14 = xla_tuple %s12, %s13
  %s15 = sld [smem:[#allocation0]]
  $region85: #{tpu_custom_call.1} parent=0
    _
  %s17 = ssub.s32 1, %s15
  %s18 = scalar_select 0, %s17, %s15
  %s19 = sshll.u32 %s0, 4
  %s20 = int_to_ptr.vmem [resolvable:$true] %s19
  %22 = dma.vmem_to_smem %s20, 16, [#allocation3], [#allocation2]
  %23 = dma.done [#allocation2], 16
  %24 = sfence
  loop: start=0, step=1, limit=4
  $region2: #{tpu_custom_call.1} parent=0 // loop_pre_header
    _
  $region3: #{tpu_custom_call.1} parent=0 // loop_header
    %s26 = sphi 0, %s30
    %p27 = scmp.ge.s32.totalorder %s26, 4
    %s36 = sphi 0, %s38
    %s39 = sphi 0, %s36
    %s40 = sphi 0, %s39
    %s56 = sphi 0, %s40
    %s60 = sphi 0, %s60
    %s62 = sphi 0, %s60
    %s63 = sphi 0, %s62
    %s77 = sphi 0, %s63
    %s81 = sphi 0, %s81
    %s83 = sphi 0, %s81
    %s84 = sphi 0, %s83
    %s98 = sphi 0, %s84
    %s102 = sphi 0, %s102
    %s104 = sphi 0, %s102
    %s105 = sphi 0, %s104
    %s119 = sphi 0, %s105
    %s123 = sphi 0, %s123
    %s125 = sphi 0, %s123
    %s126 = sphi 0, %s125
    %s140 = sphi 0, %s126
    %s144 = sphi 0, %s144
    %s146 = sphi 0, %s144
    %s147 = sphi 0, %s146
    %s161 = sphi 0, %s147
    %s165 = sphi 0, %s165
    %s167 = sphi 0, %s165
    %s168 = sphi 0, %s167
    %s182 = sphi 0, %s168
    %s186 = sphi 0, %s186
    %s188 = sphi 0, %s186
    %s189 = sphi 0, %s188
    %s203 = sphi 0, %s189
    %s207 = sphi 0, %s207
    %s209 = sphi 0, %s207
    %s210 = sphi 0, %s209
    %s224 = sphi 0, %s210
    %s228 = sphi 0, %s228
    %s230 = sphi 0, %s228
    %s231 = sphi 0, %s230
    %s245 = sphi 0, %s231
    %s249 = sphi 0, %s249
    %s251 = sphi 0, %s249
    %s252 = sphi 0, %s251
    %s266 = sphi 0, %s252
    %s272 = sphi 0, %s274
    %s275 = sphi 0, %s272
    %s276 = sphi 0, %s275
    %s292 = sphi 0, %s276
    %s298 = sphi 0, %s300
    %s301 = sphi 0, %s298
    %s302 = sphi 0, %s301
    %s318 = sphi 0, %s302
  $region4: #{tpu_custom_call.1} parent=0 // loop_header_branch
    %29 = sbr.rel (%p27) target = $region8
  $region5: #{tpu_custom_call.1} parent=0 // loop_body
    %s31 = ssub.s32 %s26, 1
    %s32 = ssub.s32 %s26, 2
    %s33 = sadd.s32 %s26, 1
    %s34 = ssub.s32 %s26, %s33
    %p35 = scmp.eq.s32.totalorder %s34, 0
    %s37 = sadd.s32 %s36, 1
    %s38 = scalar_select %p35, %s36, %s37
    %p41 = pneg %p35
    %p42 = scmp.eq.s32.totalorder %s26, 1
    %p43 = por %p41, %p42
    %p44 = scmp.ne.s32.totalorder %s36, %s39
    %p45 = scmp.eq.s32.totalorder %s26, 0
    %p46 = por %p44, %p45
    %p47 = scmp.ne.s32.totalorder %s36, %s39
    %p48 = scmp.eq.s32.totalorder %s31, 1
    %p49 = por %p47, %p48
    %p50 = scmp.ne.s32.totalorder %s39, %s40
    %p51 = scmp.eq.s32.totalorder %s31, 0
    %p52 = por %p50, %p51
    %p53 = scmp.ne.s32.totalorder %s39, %s40
    %p54 = scmp.eq.s32.totalorder %s32, 1
    %p55 = por %p53, %p54
    %p57 = scmp.ne.s32.totalorder %s40, %s56
    %p58 = scmp.eq.s32.totalorder %s32, 0
    %p59 = por %p57, %p58
    %s61 = sadd.s32 %s60, 1
    %p64 = scmp.eq.s32.totalorder %s26, 1
    %p65 = scmp.ne.s32.totalorder %s60, %s62
    %p66 = scmp.eq.s32.totalorder %s26, 0
    %p67 = por %p65, %p66
    %p68 = scmp.ne.s32.totalorder %s60, %s62
    %p69 = scmp.eq.s32.totalorder %s31, 1
    %p70 = por %p68, %p69
    %p71 = scmp.ne.s32.totalorder %s62, %s63
    %p72 = scmp.eq.s32.totalorder %s31, 0
    %p73 = por %p71, %p72
    %p74 = scmp.ne.s32.totalorder %s62, %s63
    %p75 = scmp.eq.s32.totalorder %s32, 1
    %p76 = por %p74, %p75
    %p78 = scmp.ne.s32.totalorder %s63, %s77
    %p79 = scmp.eq.s32.totalorder %s32, 0
    %p80 = por %p78, %p79
    %s82 = sadd.s32 %s81, 1
    %p85 = scmp.eq.s32.totalorder %s26, 1
    %p86 = scmp.ne.s32.totalorder %s81, %s83
    %p87 = scmp.eq.s32.totalorder %s26, 0
    %p88 = por %p86, %p87
    %p89 = scmp.ne.s32.totalorder %s81, %s83
    %p90 = scmp.eq.s32.totalorder %s31, 1
    %p91 = por %p89, %p90
    %p92 = scmp.ne.s32.totalorder %s83, %s84
    %p93 = scmp.eq.s32.totalorder %s31, 0
    %p94 = por %p92, %p93
    %p95 = scmp.ne.s32.totalorder %s83, %s84
    %p96 = scmp.eq.s32.totalorder %s32, 1
    %p97 = por %p95, %p96
    %p99 = scmp.ne.s32.totalorder %s84, %s98
    %p100 = scmp.eq.s32.totalorder %s32, 0
    %p101 = por %p99, %p100
    %s103 = sadd.s32 %s102, 1
    %p106 = scmp.eq.s32.totalorder %s26, 1
    %p107 = scmp.ne.s32.totalorder %s102, %s104
    %p108 = scmp.eq.s32.totalorder %s26, 0
    %p109 = por %p107, %p108
    %p110 = scmp.ne.s32.totalorder %s102, %s104
    %p111 = scmp.eq.s32.totalorder %s31, 1
    %p112 = por %p110, %p111
    %p113 = scmp.ne.s32.totalorder %s104, %s105
    %p114 = scmp.eq.s32.totalorder %s31, 0
    %p115 = por %p113, %p114
    %p116 = scmp.ne.s32.totalorder %s104, %s105
    %p117 = scmp.eq.s32.totalorder %s32, 1
    %p118 = por %p116, %p117
    %p120 = scmp.ne.s32.totalorder %s105, %s119
    %p121 = scmp.eq.s32.totalorder %s32, 0
    %p122 = por %p120, %p121
    %s124 = sadd.s32 %s123, 1
    %p127 = scmp.eq.s32.totalorder %s26, 1
    %p128 = scmp.ne.s32.totalorder %s123, %s125
    %p129 = scmp.eq.s32.totalorder %s26, 0
    %p130 = por %p128, %p129
    %p131 = scmp.ne.s32.totalorder %s123, %s125
    %p132 = scmp.eq.s32.totalorder %s31, 1
    %p133 = por %p131, %p132
    %p134 = scmp.ne.s32.totalorder %s125, %s126
    %p135 = scmp.eq.s32.totalorder %s31, 0
    %p136 = por %p134, %p135
    %p137 = scmp.ne.s32.totalorder %s125, %s126
    %p138 = scmp.eq.s32.totalorder %s32, 1
    %p139 = por %p137, %p138
    %p141 = scmp.ne.s32.totalorder %s126, %s140
    %p142 = scmp.eq.s32.totalorder %s32, 0
    %p143 = por %p141, %p142
    %s145 = sadd.s32 %s144, 1
    %p148 = scmp.eq.s32.totalorder %s26, 1
    %p149 = scmp.ne.s32.totalorder %s144, %s146
    %p150 = scmp.eq.s32.totalorder %s26, 0
    %p151 = por %p149, %p150
    %p152 = scmp.ne.s32.totalorder %s144, %s146
    %p153 = scmp.eq.s32.totalorder %s31, 1
    %p154 = por %p152, %p153
    %p155 = scmp.ne.s32.totalorder %s146, %s147
    %p156 = scmp.eq.s32.totalorder %s31, 0
    %p157 = por %p155, %p156
    %p158 = scmp.ne.s32.totalorder %s146, %s147
    %p159 = scmp.eq.s32.totalorder %s32, 1
    %p160 = por %p158, %p159
    %p162 = scmp.ne.s32.totalorder %s147, %s161
    %p163 = scmp.eq.s32.totalorder %s32, 0
    %p164 = por %p162, %p163
    %s166 = sadd.s32 %s165, 1
    %p169 = scmp.eq.s32.totalorder %s26, 1
    %p170 = scmp.ne.s32.totalorder %s165, %s167
    %p171 = scmp.eq.s32.totalorder %s26, 0
    %p172 = por %p170, %p171
    %p173 = scmp.ne.s32.totalorder %s165, %s167
    %p174 = scmp.eq.s32.totalorder %s31, 1
    %p175 = por %p173, %p174
    %p176 = scmp.ne.s32.totalorder %s167, %s168
    %p177 = scmp.eq.s32.totalorder %s31, 0
    %p178 = por %p176, %p177
    %p179 = scmp.ne.s32.totalorder %s167, %s168
    %p180 = scmp.eq.s32.totalorder %s32, 1
    %p181 = por %p179, %p180
    %p183 = scmp.ne.s32.totalorder %s168, %s182
    %p184 = scmp.eq.s32.totalorder %s32, 0
    %p185 = por %p183, %p184
    %s187 = sadd.s32 %s186, 1
    %p190 = scmp.eq.s32.totalorder %s26, 1
    %p191 = scmp.ne.s32.totalorder %s186, %s188
    %p192 = scmp.eq.s32.totalorder %s26, 0
    %p193 = por %p191, %p192
    %p194 = scmp.ne.s32.totalorder %s186, %s188
    %p195 = scmp.eq.s32.totalorder %s31, 1
    %p196 = por %p194, %p195
    %p197 = scmp.ne.s32.totalorder %s188, %s189
    %p198 = scmp.eq.s32.totalorder %s31, 0
    %p199 = por %p197, %p198
    %p200 = scmp.ne.s32.totalorder %s188, %s189
    %p201 = scmp.eq.s32.totalorder %s32, 1
    %p202 = por %p200, %p201
    %p204 = scmp.ne.s32.totalorder %s189, %s203
    %p205 = scmp.eq.s32.totalorder %s32, 0
    %p206 = por %p204, %p205
    %s208 = sadd.s32 %s207, 1
    %p211 = scmp.eq.s32.totalorder %s26, 1
    %p212 = scmp.ne.s32.totalorder %s207, %s209
    %p213 = scmp.eq.s32.totalorder %s26, 0
    %p214 = por %p212, %p213
    %p215 = scmp.ne.s32.totalorder %s207, %s209
    %p216 = scmp.eq.s32.totalorder %s31, 1
    %p217 = por %p215, %p216
    %p218 = scmp.ne.s32.totalorder %s209, %s210
    %p219 = scmp.eq.s32.totalorder %s31, 0
    %p220 = por %p218, %p219
    %p221 = scmp.ne.s32.totalorder %s209, %s210
    %p222 = scmp.eq.s32.totalorder %s32, 1
    %p223 = por %p221, %p222
    %p225 = scmp.ne.s32.totalorder %s210, %s224
    %p226 = scmp.eq.s32.totalorder %s32, 0
    %p227 = por %p225, %p226
    %s229 = sadd.s32 %s228, 1
    %p232 = scmp.eq.s32.totalorder %s26, 1
    %p233 = scmp.ne.s32.totalorder %s228, %s230
    %p234 = scmp.eq.s32.totalorder %s26, 0
    %p235 = por %p233, %p234
    %p236 = scmp.ne.s32.totalorder %s228, %s230
    %p237 = scmp.eq.s32.totalorder %s31, 1
    %p238 = por %p236, %p237
    %p239 = scmp.ne.s32.totalorder %s230, %s231
    %p240 = scmp.eq.s32.totalorder %s31, 0
    %p241 = por %p239, %p240
    %p242 = scmp.ne.s32.totalorder %s230, %s231
    %p243 = scmp.eq.s32.totalorder %s32, 1
    %p244 = por %p242, %p243
    %p246 = scmp.ne.s32.totalorder %s231, %s245
    %p247 = scmp.eq.s32.totalorder %s32, 0
    %p248 = por %p246, %p247
    %s250 = sadd.s32 %s249, 1
    %p253 = scmp.eq.s32.totalorder %s26, 1
    %p254 = scmp.ne.s32.totalorder %s249, %s251
    %p255 = scmp.eq.s32.totalorder %s26, 0
    %p256 = por %p254, %p255
    %p257 = scmp.ne.s32.totalorder %s249, %s251
    %p258 = scmp.eq.s32.totalorder %s31, 1
    %p259 = por %p257, %p258
    %p260 = scmp.ne.s32.totalorder %s251, %s252
    %p261 = scmp.eq.s32.totalorder %s31, 0
    %p262 = por %p260, %p261
    %p263 = scmp.ne.s32.totalorder %s251, %s252
    %p264 = scmp.eq.s32.totalorder %s32, 1
    %p265 = por %p263, %p264
    %p267 = scmp.ne.s32.totalorder %s252, %s266
    %p268 = scmp.eq.s32.totalorder %s32, 0
    %p269 = por %p267, %p268
    %s270 = ssub.s32 %s26, %s33
    %p271 = scmp.eq.s32.totalorder %s270, 0
    %s273 = sadd.s32 %s272, 1
    %s274 = scalar_select %p271, %s272, %s273
    %p277 = pneg %p271
    %p278 = scmp.eq.s32.totalorder %s26, 1
    %p279 = por %p277, %p278
    %p280 = scmp.ne.s32.totalorder %s272, %s275
    %p281 = scmp.eq.s32.totalorder %s26, 0
    %p282 = por %p280, %p281
    %p283 = scmp.ne.s32.totalorder %s272, %s275
    %p284 = scmp.eq.s32.totalorder %s31, 1
    %p285 = por %p283, %p284
    %p286 = scmp.ne.s32.totalorder %s275, %s276
    %p287 = scmp.eq.s32.totalorder %s31, 0
    %p288 = por %p286, %p287
    %p289 = scmp.ne.s32.totalorder %s275, %s276
    %p290 = scmp.eq.s32.totalorder %s32, 1
    %p291 = por %p289, %p290
    %p293 = scmp.ne.s32.totalorder %s276, %s292
    %p294 = scmp.eq.s32.totalorder %s32, 0
    %p295 = por %p293, %p294
    %s296 = ssub.s32 %s26, %s33
    %p297 = scmp.eq.s32.totalorder %s296, 0
    %s299 = sadd.s32 %s298, 1
    %s300 = scalar_select %p297, %s298, %s299
    %p303 = pneg %p297
    %p304 = scmp.eq.s32.totalorder %s26, 1
    %p305 = por %p303, %p304
    %p306 = scmp.ne.s32.totalorder %s298, %s301
    %p307 = scmp.eq.s32.totalorder %s26, 0
    %p308 = por %p306, %p307
    %p309 = scmp.ne.s32.totalorder %s298, %s301
    %p310 = scmp.eq.s32.totalorder %s31, 1
    %p311 = por %p309, %p310
    %p312 = scmp.ne.s32.totalorder %s301, %s302
    %p313 = scmp.eq.s32.totalorder %s31, 0
    %p314 = por %p312, %p313
    %p315 = scmp.ne.s32.totalorder %s301, %s302
    %p316 = scmp.eq.s32.totalorder %s32, 1
    %p317 = por %p315, %p316
    %p319 = scmp.ne.s32.totalorder %s302, %s318
    %p320 = scmp.eq.s32.totalorder %s32, 0
    %p321 = por %p319, %p320
    %p322 = scmp.le.s32.totalorder 1, %s26
    %p323 = scmp.lt.s32.totalorder %s26, 3
    %p324 = pnand %p322, %p323
    %p325 = pneg %p324
    // Predicated region
    $region9: #{tpu_custom_call.1} parent=5 // pred_check
      _
    $region10: #{tpu_custom_call.1} parent=5 // pred_check_branch
      %327 = sbr.rel (%p324) target = $region12
    $region11: #{tpu_custom_call.1} parent=5 // pred_region
      %s328 = ssub.s32 %s26, 1
      // Predicated region
      $region13: #{tpu_custom_call.1} parent=11 // pred_check
        %p329 = pneg %p73
      $region14: #{tpu_custom_call.1} parent=11 // pred_check_branch
        %331 = sbr.rel (%p329) target = $region16
      $region15: #{tpu_custom_call.1} parent=11 // pred_region
        _
      $region16: #{tpu_custom_call.1} parent=11 // pred_fallthru
        _
      // Predicated region
      $region17: #{tpu_custom_call.1} parent=11 // pred_check
        %p332 = pneg %p94
      $region18: #{tpu_custom_call.1} parent=11 // pred_check_branch
        %334 = sbr.rel (%p332) target = $region20
      $region19: #{tpu_custom_call.1} parent=11 // pred_region
        _
      $region20: #{tpu_custom_call.1} parent=11 // pred_fallthru
        _
      // Predicated region
      $region21: #{tpu_custom_call.1} parent=11 // pred_check
        %p335 = pneg %p115
      $region22: #{tpu_custom_call.1} parent=11 // pred_check_branch
        %337 = sbr.rel (%p335) target = $region24
      $region23: #{tpu_custom_call.1} parent=11 // pred_region
        _
      $region24: #{tpu_custom_call.1} parent=11 // pred_fallthru
        _
      // Predicated region
      $region25: #{tpu_custom_call.1} parent=11 // pred_check
        %p338 = pneg %p136
      $region26: #{tpu_custom_call.1} parent=11 // pred_check_branch
        %340 = sbr.rel (%p338) target = $region28
      $region27: #{tpu_custom_call.1} parent=11 // pred_region
        _
      $region28: #{tpu_custom_call.1} parent=11 // pred_fallthru
        _
      // Predicated region
      $region29: #{tpu_custom_call.1} parent=11 // pred_check
        %p341 = pneg %p157
      $region30: #{tpu_custom_call.1} parent=11 // pred_check_branch
        %343 = sbr.rel (%p341) target = $region32
      $region31: #{tpu_custom_call.1} parent=11 // pred_region
        _
      $region32: #{tpu_custom_call.1} parent=11 // pred_fallthru
        _
      // Predicated region
      $region33: #{tpu_custom_call.1} parent=11 // pred_check
        %p344 = pneg %p178
      $region34: #{tpu_custom_call.1} parent=11 // pred_check_branch
        %346 = sbr.rel (%p344) target = $region36
      $region35: #{tpu_custom_call.1} parent=11 // pred_region
        _
      $region36: #{tpu_custom_call.1} parent=11 // pred_fallthru
        _
      // Predicated region
      $region37: #{tpu_custom_call.1} parent=11 // pred_check
        %p347 = pneg %p199
      $region38: #{tpu_custom_call.1} parent=11 // pred_check_branch
        %349 = sbr.rel (%p347) target = $region40
      $region39: #{tpu_custom_call.1} parent=11 // pred_region
        _
      $region40: #{tpu_custom_call.1} parent=11 // pred_fallthru
        _
      // Predicated region
      $region41: #{tpu_custom_call.1} parent=11 // pred_check
        %p350 = pneg %p220
      $region42: #{tpu_custom_call.1} parent=11 // pred_check_branch
        %352 = sbr.rel (%p350) target = $region44
      $region43: #{tpu_custom_call.1} parent=11 // pred_region
        _
      $region44: #{tpu_custom_call.1} parent=11 // pred_fallthru
        _
      // Predicated region
      $region45: #{tpu_custom_call.1} parent=11 // pred_check
        %p353 = pneg %p241
      $region46: #{tpu_custom_call.1} parent=11 // pred_check_branch
        %355 = sbr.rel (%p353) target = $region48
      $region47: #{tpu_custom_call.1} parent=11 // pred_region
        _
      $region48: #{tpu_custom_call.1} parent=11 // pred_fallthru
        _
      // Predicated region
      $region49: #{tpu_custom_call.1} parent=11 // pred_check
        %p356 = pneg %p262
      $region50: #{tpu_custom_call.1} parent=11 // pred_check_branch
        %358 = sbr.rel (%p356) target = $region52
      $region51: #{tpu_custom_call.1} parent=11 // pred_region
        _
      $region52: #{tpu_custom_call.1} parent=11 // pred_fallthru
        _
    $region12: #{tpu_custom_call.1} parent=5 // pred_fallthru
      _
    %p359 = scmp.lt.s32.totalorder %s26, 2
    // Predicated region
    $region53: #{tpu_custom_call.1} parent=5 // pred_check
      %p360 = pneg %p359
    $region54: #{tpu_custom_call.1} parent=5 // pred_check_branch
      %362 = sbr.rel (%p360) target = $region56
    $region55: #{tpu_custom_call.1} parent=5 // pred_region
      // Predicated region
      $region57: #{tpu_custom_call.1} parent=55 // pred_check
        %p363 = pneg %p46
      $region58: #{tpu_custom_call.1} parent=55 // pred_check_branch
        %365 = sbr.rel (%p363) target = $region60
      $region59: #{tpu_custom_call.1} parent=55 // pred_region
        %p366 = scmp.lt.s32.totalorder %s26, 1
        %s367 = scalar_select %p366, %s26, 1
        %s368 = smul.addr %s367, 4
        %s369 = smul.addr %s368, 8
        %s370 = scalar_lea.vmem %s1, %s369
      $region60: #{tpu_custom_call.1} parent=55 // pred_fallthru
        _
    $region56: #{tpu_custom_call.1} parent=5 // pred_fallthru
      _
    %p371 = scmp.le.s32.totalorder 1, %s26
    %p372 = scmp.lt.s32.totalorder %s26, 3
    %p373 = pnand %p371, %p372
    %p374 = pneg %p373
    // Predicated region
    $region61: #{tpu_custom_call.1} parent=5 // pred_check
      _
    $region62: #{tpu_custom_call.1} parent=5 // pred_check_branch
      %376 = sbr.rel (%p373) target = $region64
    $region63: #{tpu_custom_call.1} parent=5 // pred_region
      %s377 = ssub.s32 %s26, 1
      %p378 = scmp.lt.s32.totalorder %s31, 1
      %s379 = scalar_select %p378, %s31, 1
      %s380 = smul.addr %s379, 4
      %s381 = smul.addr %s380, 8
      %s382 = scalar_lea.vmem %s1, %s381
      %p383 = pneg %p52
      %p384 = pneg %p49
      %p385 = pneg %p73
      %p386 = pneg %p70
      %p387 = pneg %p94
      %p388 = pneg %p91
      %p389 = pneg %p115
      %p390 = pneg %p112
      %p391 = pneg %p136
      %p392 = pneg %p133
      %p393 = pneg %p157
      %p394 = pneg %p154
      %p395 = pneg %p178
      %p396 = pneg %p175
      %p397 = pneg %p199
      %p398 = pneg %p196
      %p399 = pneg %p220
      %p400 = pneg %p217
      %p401 = pneg %p241
      %p402 = pneg %p238
      %p403 = pneg %p262
      %p404 = pneg %p259
      %p405 = pneg %p288
      %p406 = pneg %p285
      %p407 = scmp.lt.s32.totalorder %s31, 1
      %s408 = scalar_select %p407, %s31, 1
      %s409 = smul.addr %s408, 4
      %s410 = smul.addr %s409, 8
      %s411 = scalar_lea.vmem %s12, %s410
      %p412 = pneg %p314
      %p413 = pneg %p311
      %p414 = scmp.lt.s32.totalorder %s31, 1
      %s415 = scalar_select %p414, %s31, 1
      %s416 = smul.addr %s415, 4
      %s417 = smul.addr %s416, 8
      %s418 = scalar_lea.vmem %s13, %s417
      %p419 = scmp.lt.s32.totalorder %s31, 1
      %s420 = scalar_select %p419, %s31, 1
      %s421 = smul.addr %s420, 4
      %s422 = smul.addr %s421, 8
      %s423 = scalar_lea.vmem %s1, %s422
      %p424 = scmp.lt.s32.totalorder %s31, 1
      %s425 = scalar_select %p424, %s31, 1
      %s426 = smul.addr %s425, 4
      %s427 = smul.addr %s426, 8
      %s428 = scalar_lea.vmem %s12, %s427
      %p429 = scmp.lt.s32.totalorder %s31, 1
      %s430 = scalar_select %p429, %s31, 1
      %s431 = smul.addr %s430, 4
      %s432 = smul.addr %s431, 8
      %s433 = scalar_lea.vmem %s13, %s432
      %s435 = sld [smem:[#allocation3 + %s31]]
      %v436 = vlaneseq
      %v437 = vand.u32 %v436, 127
      %vm438 = vcmp.ge.s32.totalorder %v437, 2
      %s439 = sadd.s32 %s435, 2
      %v440 = vstv %s439
      %vm441 = vcmp.lt.s32.totalorder %v437, %v440
      %vm442 = vmand %vm438, %vm441
      %v443 = vsel %vm442, 1, 0
      %v444 = vcvt.s32.f32 %v443
      %vm445 = vcmp.lt.s32.totalorder %v437, 18
      %vm446 = vmand %vm438, %vm445
      %v447 = vsel %vm446, 1, 0
      %v448 = vcvt.s32.f32 %v447
      %v449 = vstv %s435
      %vm450 = vcmp.lt.s32.totalorder %v437, %v449
      %v451 = vsel %vm450, 1, 0
      %v452 = vcvt.s32.f32 %v451
      %v453 = vld [vmem:[%s423] sm:$0xff]
      %v454 = vld [vmem:[%s423 + $0x8] sm:$0xff]
      %v455 = vld [vmem:[%s423 + $0x10] sm:$0xff]
      %v456 = vld [vmem:[%s423 + $0x18] sm:$0xff]
      %461 = vrot.lane.b32.xlu0 %v453, 127
      %v462 = vpop.permute.xlu0 %461
      %463 = vrot.lane.b32.xlu0 %v454, 127
      %v464 = vpop.permute.xlu0 %463
      %465 = vrot.lane.b32.xlu0 %v455, 127
      %v466 = vpop.permute.xlu0 %465
      %467 = vrot.lane.b32.xlu0 %v456, 127
      %v468 = vpop.permute.xlu0 %467
      %473 = vrot.lane.b32.xlu0 %v453, 126
      %v474 = vpop.permute.xlu0 %473
      %475 = vrot.lane.b32.xlu0 %v454, 126
      %v476 = vpop.permute.xlu0 %475
      %477 = vrot.lane.b32.xlu0 %v455, 126
      %v478 = vpop.permute.xlu0 %477
      %479 = vrot.lane.b32.xlu0 %v456, 126
      %v480 = vpop.permute.xlu0 %479
      %485 = vrot.lane.b32.xlu0 %v453, 125
      %v486 = vpop.permute.xlu0 %485
      %487 = vrot.lane.b32.xlu0 %v454, 125
      %v488 = vpop.permute.xlu0 %487
      %489 = vrot.lane.b32.xlu0 %v455, 125
      %v490 = vpop.permute.xlu0 %489
      %491 = vrot.lane.b32.xlu0 %v456, 125
      %v492 = vpop.permute.xlu0 %491
      %497 = vrot.lane.b32.xlu0 %v453, 124
      %v498 = vpop.permute.xlu0 %497
      %499 = vrot.lane.b32.xlu0 %v454, 124
      %v500 = vpop.permute.xlu0 %499
      %501 = vrot.lane.b32.xlu0 %v455, 124
      %v502 = vpop.permute.xlu0 %501
      %503 = vrot.lane.b32.xlu0 %v456, 124
      %v504 = vpop.permute.xlu0 %503
      %v509 = vld [vmem:[%s2] sm:$0xff]
      %v510 = vld [vmem:[%s2 + $0x8] sm:$0xff]
      %v511 = vld [vmem:[%s2 + $0x10] sm:$0xff]
      %v512 = vld [vmem:[%s2 + $0x18] sm:$0xff]
      %v513 = vpack.c.bf16 %v454, %v453
      %v514 = vpack.c.bf16 %v456, %v455
      %v515 = vpack.c.bf16 %v464, %v462
      %v516 = vpack.c.bf16 %v468, %v466
      %v517 = vpack.c.bf16 %v476, %v474
      %v518 = vpack.c.bf16 %v480, %v478
      %v519 = vpack.c.bf16 %v488, %v486
      %v520 = vpack.c.bf16 %v492, %v490
      %v521 = vpack.c.bf16 %v500, %v498
      %v522 = vpack.c.bf16 %v504, %v502
      %v523 = vld [vmem:[%s3] sm:$0xff]
      %v524 = vld [vmem:[%s3 + $0x8] sm:$0xff]
      %v525 = vld [vmem:[%s3 + $0x10] sm:$0xff]
      %v526 = vld [vmem:[%s3 + $0x18] sm:$0xff]
      %528 = vset.pattern.permute.xlu0 0
      %529 = vperm.xlu0 %528, %v523
      %v530 = vpop.permute.xlu0 %529
      %533 = vset.pattern.permute.xlu0 0
      %534 = vperm.xlu0 %533, %v524
      %v535 = vpop.permute.xlu0 %534
      %538 = vset.pattern.permute.xlu0 0
      %539 = vperm.xlu0 %538, %v525
      %v540 = vpop.permute.xlu0 %539
      %543 = vset.pattern.permute.xlu0 0
      %544 = vperm.xlu0 %543, %v526
      %v545 = vpop.permute.xlu0 %544
      %v551 = vunpack.c.l.b16 %v509
      %v552 = vunpack.c.h.b16 %v509
      %v553 = vunpack.c.l.b16 %v510
      %v554 = vunpack.c.h.b16 %v510
      %v555 = vunpack.c.l.b16 %v511
      %v556 = vunpack.c.h.b16 %v511
      %v557 = vunpack.c.l.b16 %v512
      %v558 = vunpack.c.h.b16 %v512
      %v559 = vpack.c.b16 %v553, %v551
      %v560 = vpack.c.b16 %v554, %v552
      %v561 = vpack.c.b16 %v557, %v555
      %v562 = vpack.c.b16 %v558, %v556
      %vm565 = vcmask 261120
      %v567 = vsel %vm565, %v560, 0
      %v570 = vsel %vm565, %v562, 0
      %572 = vmatprep.subr.bf16.mxu0 0
      %573 = vmatpush1.bf16.msra.mxu0 %v513
      %574 = vmatprep.subr.bf16.mxu0 0
      %575 = vmatpush1.bf16.msra.mxu0 %v514
      %576 = vmatprep.subr.bf16.mxu0 0
      %577 = vmatpush1.bf16.msra.mxu0 %v515
      %578 = vmatprep.subr.bf16.mxu0 0
      %579 = vmatpush1.bf16.msra.mxu0 %v516
      %580 = vmatprep.subr.bf16.mxu0 0
      %581 = vmatpush1.bf16.msra.mxu0 %v517
      %582 = vmatprep.subr.bf16.mxu0 0
      %583 = vmatpush1.bf16.msra.mxu0 %v518
      %584 = vmatprep.subr.bf16.mxu0 0
      %585 = vmatpush1.bf16.msra.mxu0 %v519
      %586 = vmatprep.subr.bf16.mxu0 0
      %587 = vmatpush1.bf16.msra.mxu0 %v520
      %588 = vmatprep.subr.bf16.mxu0 0
      %589 = vmatpush1.bf16.msra.mxu0 %v521
      %590 = vmatprep.subr.bf16.mxu0 0
      %591 = vmatpush1.bf16.msra.mxu0 %v522
      %592 = vmatprep.subr.bf16.mxu0 0
      %593 = vmatpush1.bf16.msra.mxu0 0
      %594 = vmatprep.subr.bf16.mxu0 0
      %595 = vmatpush1.bf16.msra.mxu0 0
      %596 = vmatprep.subr.bf16.mxu0 0
      %597 = vmatpush1.bf16.msra.mxu0 0
      %598 = vmatprep.subr.bf16.mxu0 0
      %599 = vmatpush1.bf16.msra.mxu0 0
      %600 = vmatprep.subr.bf16.mxu0 0
      %601 = vmatpush1.bf16.msra.mxu0 0
      %602 = vmatprep.subr.bf16.mxu0 0
      %603 = vmatpush1.bf16.msra.mxu0 0
      %604 = vmatprep.mubr.bf16.mxu0 %v567
      %605 = vmatmul.mubr.bf16.gmra.mrb[0].mxu0 %v559
      %v606 = vpop.f32.mrb[0].mxu0
      %v607 = vadd.f32 %v530, %v606
      %v608 = vpop.f32.mrb[0].mxu0
      %v609 = vpop.f32.mrb[0].mxu0
      %v610 = vadd.f32 %v535, %v609
      %v611 = vpop.f32.mrb[0].mxu0
      %612 = vmatprep.mubr.bf16.mxu0 %v570
      %613 = vmatmul.mubr.bf16.gmra.mrb[0].mxu0 %v561
      %v614 = vpop.f32.mrb[0].mxu0
      %v615 = vadd.f32 %v540, %v614
      %v616 = vpop.f32.mrb[0].mxu0
      %v617 = vpop.f32.mrb[0].mxu0
      %v618 = vadd.f32 %v545, %v617
      %v619 = vpop.f32.mrb[0].mxu0
      %620 = vdwg.mxu0
      %v621 = vmax.f32 %v607, 0.0
      %v622 = vmax.f32 %v610, 0.0
      %v623 = vmax.f32 %v615, 0.0
      %v624 = vmax.f32 %v618, 0.0
      %v625 = vmul.f32 %v621, %v444
      %v626 = vmul.f32 %v622, %v444
      %v627 = vmul.f32 %v623, %v444
      %v628 = vmul.f32 %v624, %v444
      %633 = vrot.lane.b32.xlu0 %v625, 2
      %v634 = vpop.permute.xlu0 %633
      %635 = vrot.lane.b32.xlu0 %v626, 2
      %v636 = vpop.permute.xlu0 %635
      %637 = vrot.lane.b32.xlu0 %v627, 2
      %v638 = vpop.permute.xlu0 %637
      %639 = vrot.lane.b32.xlu0 %v628, 2
      %v640 = vpop.permute.xlu0 %639
      %v645 = vadd.f32 %v453, %v634
      %v646 = vadd.f32 %v454, %v636
      %v647 = vadd.f32 %v455, %v638
      %v648 = vadd.f32 %v456, %v640
      %vm649 = vcmask 179216
      %v650 = vsel %vm649, %v645, 0.0
      %v651 = vsel %vm649, %v646, 0.0
      %v652 = vadd.f32 %v650, %v651
      %v653 = vsel %vm649, %v647, 0.0
      %v654 = vadd.f32 %v652, %v653
      %v655 = vsel %vm649, %v648, 0.0
      %v656 = vadd.f32 %v654, %v655
      %v657 = vrot.slane %v656, 4
      %v658 = vadd.f32 %v656, %v657
      %v659 = vrot.slane %v658, 2
      %v660 = vadd.f32 %v658, %v659
      %v661 = vrot.slane %v660, 1
      %v662 = vadd.f32 %v660, %v661
      %v663 = vrcp.pop 32.0
      %v664 = vmul.f32 %v662, %v663
      %v665 = vsub.f32 %v645, %v664
      %v666 = vsub.f32 %v646, %v664
      %v667 = vsub.f32 %v647, %v664
      %v668 = vsub.f32 %v648, %v664
      %v669 = vmul.f32 %v665, %v665
      %v670 = vmul.f32 %v666, %v666
      %v671 = vmul.f32 %v667, %v667
      %v672 = vmul.f32 %v668, %v668
      %v673 = vsel %vm649, %v669, 0.0
      %v674 = vsel %vm649, %v670, 0.0
      %v675 = vadd.f32 %v673, %v674
      %v676 = vsel %vm649, %v671, 0.0
      %v677 = vadd.f32 %v675, %v676
      %v678 = vsel %vm649, %v672, 0.0
      %v679 = vadd.f32 %v677, %v678
      %v680 = vrot.slane %v679, 4
      %v681 = vadd.f32 %v679, %v680
      %v682 = vrot.slane %v681, 2
      %v683 = vadd.f32 %v681, %v682
      %v684 = vrot.slane %v683, 1
      %v685 = vadd.f32 %v683, %v684
      %v686 = vmul.f32 %v685, %v663
      %v687 = vadd.f32 %v686, 0.0001
      %v688 = vrsqrt.pop %v687
      %v689 = vmul.f32 %v665, %v688
      %v690 = vmul.f32 %v666, %v688
      %v691 = vmul.f32 %v667, %v688
      %v692 = vmul.f32 %v668, %v688
      %v693 = vld [vmem:[%s4] sm:$0xff]
      %v694 = vld [vmem:[%s4 + $0x8] sm:$0xff]
      %v695 = vld [vmem:[%s4 + $0x10] sm:$0xff]
      %v696 = vld [vmem:[%s4 + $0x18] sm:$0xff]
      %698 = vset.pattern.permute.xlu0 0
      %699 = vperm.xlu0 %698, %v693
      %v700 = vpop.permute.xlu0 %699
      %703 = vset.pattern.permute.xlu0 0
      %704 = vperm.xlu0 %703, %v694
      %v705 = vpop.permute.xlu0 %704
      %708 = vset.pattern.permute.xlu0 0
      %709 = vperm.xlu0 %708, %v695
      %v710 = vpop.permute.xlu0 %709
      %713 = vset.pattern.permute.xlu0 0
      %714 = vperm.xlu0 %713, %v696
      %v715 = vpop.permute.xlu0 %714
      %v717 = vmul.f32 %v689, %v700
      %v718 = vmul.f32 %v690, %v705
      %v719 = vmul.f32 %v691, %v710
      %v720 = vmul.f32 %v692, %v715
      %v721 = vld [vmem:[%s5] sm:$0xff]
      %v722 = vld [vmem:[%s5 + $0x8] sm:$0xff]
      %v723 = vld [vmem:[%s5 + $0x10] sm:$0xff]
      %v724 = vld [vmem:[%s5 + $0x18] sm:$0xff]
      %726 = vset.pattern.permute.xlu0 0
      %727 = vperm.xlu0 %726, %v721
      %v728 = vpop.permute.xlu0 %727
      %731 = vset.pattern.permute.xlu0 0
      %732 = vperm.xlu0 %731, %v722
      %v733 = vpop.permute.xlu0 %732
      %736 = vset.pattern.permute.xlu0 0
      %737 = vperm.xlu0 %736, %v723
      %v738 = vpop.permute.xlu0 %737
      %741 = vset.pattern.permute.xlu0 0
      %742 = vperm.xlu0 %741, %v724
      %v743 = vpop.permute.xlu0 %742
      %v745 = vadd.f32 %v717, %v728
      %v746 = vadd.f32 %v718, %v733
      %v747 = vadd.f32 %v719, %v738
      %v748 = vadd.f32 %v720, %v743
      %750 = vrot.lane.b32.xlu0 %v448, 2
      %v751 = vpop.permute.xlu0 %750
      %v753 = vmul.f32 %v745, %v751
      %v754 = vmul.f32 %v746, %v751
      %v755 = vmul.f32 %v747, %v751
      %v756 = vmul.f32 %v748, %v751
      %761 = vrot.lane.b32.xlu0 %v753, 127
      %v762 = vpop.permute.xlu0 %761
      %763 = vrot.lane.b32.xlu0 %v754, 127
      %v764 = vpop.permute.xlu0 %763
      %765 = vrot.lane.b32.xlu0 %v755, 127
      %v766 = vpop.permute.xlu0 %765
      %767 = vrot.lane.b32.xlu0 %v756, 127
      %v768 = vpop.permute.xlu0 %767
      %773 = vrot.lane.b32.xlu0 %v753, 126
      %v774 = vpop.permute.xlu0 %773
      %775 = vrot.lane.b32.xlu0 %v754, 126
      %v776 = vpop.permute.xlu0 %775
      %777 = vrot.lane.b32.xlu0 %v755, 126
      %v778 = vpop.permute.xlu0 %777
      %779 = vrot.lane.b32.xlu0 %v756, 126
      %v780 = vpop.permute.xlu0 %779
      %785 = vrot.lane.b32.xlu0 %v753, 125
      %v786 = vpop.permute.xlu0 %785
      %787 = vrot.lane.b32.xlu0 %v754, 125
      %v788 = vpop.permute.xlu0 %787
      %789 = vrot.lane.b32.xlu0 %v755, 125
      %v790 = vpop.permute.xlu0 %789
      %791 = vrot.lane.b32.xlu0 %v756, 125
      %v792 = vpop.permute.xlu0 %791
      %797 = vrot.lane.b32.xlu0 %v753, 124
      %v798 = vpop.permute.xlu0 %797
      %799 = vrot.lane.b32.xlu0 %v754, 124
      %v800 = vpop.permute.xlu0 %799
      %801 = vrot.lane.b32.xlu0 %v755, 124
      %v802 = vpop.permute.xlu0 %801
      %803 = vrot.lane.b32.xlu0 %v756, 124
      %v804 = vpop.permute.xlu0 %803
      %v809 = vld [vmem:[%s6] sm:$0xff]
      %v810 = vld [vmem:[%s6 + $0x8] sm:$0xff]
      %v811 = vld [vmem:[%s6 + $0x10] sm:$0xff]
      %v812 = vld [vmem:[%s6 + $0x18] sm:$0xff]
      %v813 = vpack.c.bf16 %v754, %v753
      %v814 = vpack.c.bf16 %v756, %v755
      %v815 = vpack.c.bf16 %v764, %v762
      %v816 = vpack.c.bf16 %v768, %v766
      %v817 = vpack.c.bf16 %v776, %v774
      %v818 = vpack.c.bf16 %v780, %v778
      %v819 = vpack.c.bf16 %v788, %v786
      %v820 = vpack.c.bf16 %v792, %v790
      %v821 = vpack.c.bf16 %v800, %v798
      %v822 = vpack.c.bf16 %v804, %v802
      %v823 = vld [vmem:[%s7] sm:$0xff]
      %v824 = vld [vmem:[%s7 + $0x8] sm:$0xff]
      %v825 = vld [vmem:[%s7 + $0x10] sm:$0xff]
      %v826 = vld [vmem:[%s7 + $0x18] sm:$0xff]
      %828 = vset.pattern.permute.xlu0 0
      %829 = vperm.xlu0 %828, %v823
      %v830 = vpop.permute.xlu0 %829
      %833 = vset.pattern.permute.xlu0 0
      %834 = vperm.xlu0 %833, %v824
      %v835 = vpop.permute.xlu0 %834
      %838 = vset.pattern.permute.xlu0 0
      %839 = vperm.xlu0 %838, %v825
      %v840 = vpop.permute.xlu0 %839
      %843 = vset.pattern.permute.xlu0 0
      %844 = vperm.xlu0 %843, %v826
      %v845 = vpop.permute.xlu0 %844
      %v851 = vunpack.c.l.b16 %v809
      %v852 = vunpack.c.h.b16 %v809
      %v853 = vunpack.c.l.b16 %v810
      %v854 = vunpack.c.h.b16 %v810
      %v855 = vunpack.c.l.b16 %v811
      %v856 = vunpack.c.h.b16 %v811
      %v857 = vunpack.c.l.b16 %v812
      %v858 = vunpack.c.h.b16 %v812
      %v859 = vpack.c.b16 %v853, %v851
      %v860 = vpack.c.b16 %v854, %v852
      %v861 = vpack.c.b16 %v857, %v855
      %v862 = vpack.c.b16 %v858, %v856
      %875 = vrot.lane.b32.xlu0 %v813, 126
      %v876 = vpop.permute.xlu0 %875
      %877 = vrot.lane.b32.xlu0 %v814, 126
      %v878 = vpop.permute.xlu0 %877
      %879 = vrot.lane.b32.xlu0 %v815, 126
      %v880 = vpop.permute.xlu0 %879
      %881 = vrot.lane.b32.xlu0 %v816, 126
      %v882 = vpop.permute.xlu0 %881
      %883 = vrot.lane.b32.xlu0 %v817, 126
      %v884 = vpop.permute.xlu0 %883
      %885 = vrot.lane.b32.xlu0 %v818, 126
      %v886 = vpop.permute.xlu0 %885
      %887 = vrot.lane.b32.xlu0 %v819, 126
      %v888 = vpop.permute.xlu0 %887
      %889 = vrot.lane.b32.xlu0 %v820, 126
      %v890 = vpop.permute.xlu0 %889
      %891 = vrot.lane.b32.xlu0 %v821, 126
      %v892 = vpop.permute.xlu0 %891
      %893 = vrot.lane.b32.xlu0 %v822, 126
      %v894 = vpop.permute.xlu0 %893
      %v906 = vsel %vm565, %v860, 0
      %v909 = vsel %vm565, %v862, 0
      %911 = vmatprep.subr.bf16.mxu0 0
      %912 = vmatpush1.bf16.msra.mxu0 %v876
      %913 = vmatprep.subr.bf16.mxu0 0
      %914 = vmatpush1.bf16.msra.mxu0 %v878
      %915 = vmatprep.subr.bf16.mxu0 0
      %916 = vmatpush1.bf16.msra.mxu0 %v880
      %917 = vmatprep.subr.bf16.mxu0 0
      %918 = vmatpush1.bf16.msra.mxu0 %v882
      %919 = vmatprep.subr.bf16.mxu0 0
      %920 = vmatpush1.bf16.msra.mxu0 %v884
      %921 = vmatprep.subr.bf16.mxu0 0
      %922 = vmatpush1.bf16.msra.mxu0 %v886
      %923 = vmatprep.subr.bf16.mxu0 0
      %924 = vmatpush1.bf16.msra.mxu0 %v888
      %925 = vmatprep.subr.bf16.mxu0 0
      %926 = vmatpush1.bf16.msra.mxu0 %v890
      %927 = vmatprep.subr.bf16.mxu0 0
      %928 = vmatpush1.bf16.msra.mxu0 %v892
      %929 = vmatprep.subr.bf16.mxu0 0
      %930 = vmatpush1.bf16.msra.mxu0 %v894
      %931 = vmatprep.subr.bf16.mxu0 0
      %932 = vmatpush1.bf16.msra.mxu0 0
      %933 = vmatprep.subr.bf16.mxu0 0
      %934 = vmatpush1.bf16.msra.mxu0 0
      %935 = vmatprep.subr.bf16.mxu0 0
      %936 = vmatpush1.bf16.msra.mxu0 0
      %937 = vmatprep.subr.bf16.mxu0 0
      %938 = vmatpush1.bf16.msra.mxu0 0
      %939 = vmatprep.subr.bf16.mxu0 0
      %940 = vmatpush1.bf16.msra.mxu0 0
      %941 = vmatprep.subr.bf16.mxu0 0
      %942 = vmatpush1.bf16.msra.mxu0 0
      %943 = vmatprep.mubr.bf16.mxu0 %v906
      %944 = vmatmul.mubr.bf16.gmra.mrb[0].mxu0 %v859
      %v945 = vpop.f32.mrb[0].mxu0
      %v946 = vadd.f32 %v830, %v945
      %v947 = vpop.f32.mrb[0].mxu0
      %v948 = vpop.f32.mrb[0].mxu0
      %v949 = vadd.f32 %v835, %v948
      %v950 = vpop.f32.mrb[0].mxu0
      %951 = vmatprep.mubr.bf16.mxu0 %v909
      %952 = vmatmul.mubr.bf16.gmra.mrb[0].mxu0 %v861
      %v953 = vpop.f32.mrb[0].mxu0
      %v954 = vadd.f32 %v840, %v953
      %v955 = vpop.f32.mrb[0].mxu0
      %v956 = vpop.f32.mrb[0].mxu0
      %v957 = vadd.f32 %v845, %v956
      %v958 = vpop.f32.mrb[0].mxu0
      %959 = vdwg.mxu0
      %v960 = vmax.f32 %v946, 0.0
      %v961 = vmax.f32 %v949, 0.0
      %v962 = vmax.f32 %v954, 0.0
      %v963 = vmax.f32 %v957, 0.0
      %v964 = vmul.f32 %v960, %v452
      %v965 = vmul.f32 %v961, %v452
      %v966 = vmul.f32 %v962, %v452
      %v967 = vmul.f32 %v963, %v452
      %972 = vrot.lane.b32.xlu0 %v964, 4
      %v973 = vpop.permute.xlu0 %972
      %974 = vrot.lane.b32.xlu0 %v965, 4
      %v975 = vpop.permute.xlu0 %974
      %976 = vrot.lane.b32.xlu0 %v966, 4
      %v977 = vpop.permute.xlu0 %976
      %978 = vrot.lane.b32.xlu0 %v967, 4
      %v979 = vpop.permute.xlu0 %978
      %v984 = vadd.f32 %v745, %v973
      %v985 = vadd.f32 %v746, %v975
      %v986 = vadd.f32 %v747, %v977
      %v987 = vadd.f32 %v748, %v979
      %vm988 = vcmask 162848
      %v989 = vsel %vm988, %v984, 0.0
      %v990 = vsel %vm988, %v985, 0.0
      %v991 = vadd.f32 %v989, %v990
      %v992 = vsel %vm988, %v986, 0.0
      %v993 = vadd.f32 %v991, %v992
      %v994 = vsel %vm988, %v987, 0.0
      %v995 = vadd.f32 %v993, %v994
      %v996 = vrot.slane %v995, 4
      %v997 = vadd.f32 %v995, %v996
      %v998 = vrot.slane %v997, 2
      %v999 = vadd.f32 %v997, %v998
      %v1000 = vrot.slane %v999, 1
      %v1001 = vadd.f32 %v999, %v1000
      %v1002 = vmul.f32 %v1001, %v663
      %v1003 = vsub.f32 %v984, %v1002
      %v1004 = vsub.f32 %v985, %v1002
      %v1005 = vsub.f32 %v986, %v1002
      %v1006 = vsub.f32 %v987, %v1002
      %v1007 = vmul.f32 %v1003, %v1003
      %v1008 = vmul.f32 %v1004, %v1004
      %v1009 = vmul.f32 %v1005, %v1005
      %v1010 = vmul.f32 %v1006, %v1006
      %v1011 = vsel %vm988, %v1007, 0.0
      %v1012 = vsel %vm988, %v1008, 0.0
      %v1013 = vadd.f32 %v1011, %v1012
      %v1014 = vsel %vm988, %v1009, 0.0
      %v1015 = vadd.f32 %v1013, %v1014
      %v1016 = vsel %vm988, %v1010, 0.0
      %v1017 = vadd.f32 %v1015, %v1016
      %v1018 = vrot.slane %v1017, 4
      %v1019 = vadd.f32 %v1017, %v1018
      %v1020 = vrot.slane %v1019, 2
      %v1021 = vadd.f32 %v1019, %v1020
      %v1022 = vrot.slane %v1021, 1
      %v1023 = vadd.f32 %v1021, %v1022
      %v1024 = vmul.f32 %v1023, %v663
      %v1025 = vadd.f32 %v1024, 0.0001
      %v1026 = vrsqrt.pop %v1025
      %v1027 = vmul.f32 %v1003, %v1026
      %v1028 = vmul.f32 %v1004, %v1026
      %v1029 = vmul.f32 %v1005, %v1026
      %v1030 = vmul.f32 %v1006, %v1026
      %v1031 = vld [vmem:[%s8] sm:$0xff]
      %v1032 = vld [vmem:[%s8 + $0x8] sm:$0xff]
      %v1033 = vld [vmem:[%s8 + $0x10] sm:$0xff]
      %v1034 = vld [vmem:[%s8 + $0x18] sm:$0xff]
      %1036 = vset.pattern.permute.xlu0 0
      %1037 = vperm.xlu0 %1036, %v1031
      %v1038 = vpop.permute.xlu0 %1037
      %1041 = vset.pattern.permute.xlu0 0
      %1042 = vperm.xlu0 %1041, %v1032
      %v1043 = vpop.permute.xlu0 %1042
      %1046 = vset.pattern.permute.xlu0 0
      %1047 = vperm.xlu0 %1046, %v1033
      %v1048 = vpop.permute.xlu0 %1047
      %1051 = vset.pattern.permute.xlu0 0
      %1052 = vperm.xlu0 %1051, %v1034
      %v1053 = vpop.permute.xlu0 %1052
      %v1055 = vmul.f32 %v1027, %v1038
      %v1056 = vmul.f32 %v1028, %v1043
      %v1057 = vmul.f32 %v1029, %v1048
      %v1058 = vmul.f32 %v1030, %v1053
      %v1059 = vld [vmem:[%s9] sm:$0xff]
      %v1060 = vld [vmem:[%s9 + $0x8] sm:$0xff]
      %v1061 = vld [vmem:[%s9 + $0x10] sm:$0xff]
      %v1062 = vld [vmem:[%s9 + $0x18] sm:$0xff]
      %1064 = vset.pattern.permute.xlu0 0
      %1065 = vperm.xlu0 %1064, %v1059
      %v1066 = vpop.permute.xlu0 %1065
      %1069 = vset.pattern.permute.xlu0 0
      %1070 = vperm.xlu0 %1069, %v1060
      %v1071 = vpop.permute.xlu0 %1070
      %1074 = vset.pattern.permute.xlu0 0
      %1075 = vperm.xlu0 %1074, %v1061
      %v1076 = vpop.permute.xlu0 %1075
      %1079 = vset.pattern.permute.xlu0 0
      %1080 = vperm.xlu0 %1079, %v1062
      %v1081 = vpop.permute.xlu0 %1080
      %v1083 = vadd.f32 %v1055, %v1066
      %v1084 = vadd.f32 %v1056, %v1071
      %v1085 = vadd.f32 %v1057, %v1076
      %v1086 = vadd.f32 %v1058, %v1081
      %v1087 = vld [vmem:[%s10] sm:$0xf]
      %v1088 = vld [vmem:[%s10 + $0x4] sm:$0xf]
      %v1089 = vld [vmem:[%s10 + $0x8] sm:$0xf]
      %v1090 = vld [vmem:[%s10 + $0xc] sm:$0xf]
      %v1091 = vld [vmem:[%s10 + $0x10] sm:$0xf]
      %v1092 = vld [vmem:[%s10 + $0x14] sm:$0xf]
      %v1093 = vld [vmem:[%s10 + $0x18] sm:$0xf]
      %v1094 = vld [vmem:[%s10 + $0x1c] sm:$0xf]
      %v1095 = vpack.c.bf16 %v1084, %v1083
      %v1096 = vpack.c.bf16 %v1086, %v1085
      %v1097 = vld [vmem:[%s11] sm:$0xff]
      %v1098 = vld [vmem:[%s11 + $0x8] sm:$0xff]
      %v1099 = vld [vmem:[%s11 + $0x10] sm:$0xff]
      %v1100 = vld [vmem:[%s11 + $0x18] sm:$0xff]
      %v1101 = vld [vmem:[%s11 + $0x20] sm:$0xff]
      %v1102 = vld [vmem:[%s11 + $0x28] sm:$0xff]
      %v1103 = vld [vmem:[%s11 + $0x30] sm:$0xff]
      %v1104 = vld [vmem:[%s11 + $0x38] sm:$0xff]
      %1106 = vset.pattern.permute.xlu0 0
      %1107 = vperm.xlu0 %1106, %v1097
      %v1108 = vpop.permute.xlu0 %1107
      %1111 = vset.pattern.permute.xlu0 0
      %1112 = vperm.xlu0 %1111, %v1098
      %v1113 = vpop.permute.xlu0 %1112
      %1116 = vset.pattern.permute.xlu0 0
      %1117 = vperm.xlu0 %1116, %v1099
      %v1118 = vpop.permute.xlu0 %1117
      %1121 = vset.pattern.permute.xlu0 0
      %1122 = vperm.xlu0 %1121, %v1100
      %v1123 = vpop.permute.xlu0 %1122
      %1126 = vset.pattern.permute.xlu0 0
      %1127 = vperm.xlu0 %1126, %v1101
      %v1128 = vpop.permute.xlu0 %1127
      %1131 = vset.pattern.permute.xlu0 0
      %1132 = vperm.xlu0 %1131, %v1102
      %v1133 = vpop.permute.xlu0 %1132
      %1136 = vset.pattern.permute.xlu0 0
      %1137 = vperm.xlu0 %1136, %v1103
      %v1138 = vpop.permute.xlu0 %1137
      %1141 = vset.pattern.permute.xlu0 0
      %1142 = vperm.xlu0 %1141, %v1104
      %v1143 = vpop.permute.xlu0 %1142
      %v1153 = vunpack.c.l.b16 %v1087
      %v1154 = vunpack.c.l.b16 %v1088
      %v1155 = vunpack.c.l.b16 %v1089
      %v1156 = vunpack.c.l.b16 %v1090
      %v1157 = vunpack.c.l.b16 %v1091
      %v1158 = vunpack.c.l.b16 %v1092
      %v1159 = vunpack.c.l.b16 %v1093
      %v1160 = vunpack.c.l.b16 %v1094
      %v1161 = vpack.c.b16 %v1154, %v1153
      %v1162 = vpack.c.b16 %v1156, %v1155
      %v1163 = vpack.c.b16 %v1158, %v1157
      %v1164 = vpack.c.b16 %v1160, %v1159
      %1167 = vrot.lane.b32.xlu0 %v1095, 124
      %v1168 = vpop.permute.xlu0 %1167
      %1169 = vrot.lane.b32.xlu0 %v1096, 124
      %v1170 = vpop.permute.xlu0 %1169
      %v1174 = vsel %vm565, %v1161, 0
      %v1177 = vsel %vm565, %v1162, 0
      %v1180 = vsel %vm565, %v1163, 0
      %v1183 = vsel %vm565, %v1164, 0
      %1185 = vmatprep.subr.bf16.mxu0 0
      %1186 = vmatpush1.bf16.msra.mxu0 %v1168
      %1187 = vmatprep.subr.bf16.mxu0 0
      %1188 = vmatpush1.bf16.msra.mxu0 %v1170
      %1189 = vmatprep.subr.bf16.mxu0 0
      %1190 = vmatpush1.bf16.msra.mxu0 0
      %1191 = vmatprep.subr.bf16.mxu0 0
      %1192 = vmatpush1.bf16.msra.mxu0 0
      %1193 = vmatprep.subr.bf16.mxu0 0
      %1194 = vmatpush1.bf16.msra.mxu0 0
      %1195 = vmatprep.subr.bf16.mxu0 0
      %1196 = vmatpush1.bf16.msra.mxu0 0
      %1197 = vmatprep.subr.bf16.mxu0 0
      %1198 = vmatpush1.bf16.msra.mxu0 0
      %1199 = vmatprep.subr.bf16.mxu0 0
      %1200 = vmatpush1.bf16.msra.mxu0 0
      %1201 = vmatprep.subr.bf16.mxu0 0
      %1202 = vmatpush1.bf16.msra.mxu0 0
      %1203 = vmatprep.subr.bf16.mxu0 0
      %1204 = vmatpush1.bf16.msra.mxu0 0
      %1205 = vmatprep.subr.bf16.mxu0 0
      %1206 = vmatpush1.bf16.msra.mxu0 0
      %1207 = vmatprep.subr.bf16.mxu0 0
      %1208 = vmatpush1.bf16.msra.mxu0 0
      %1209 = vmatprep.subr.bf16.mxu0 0
      %1210 = vmatpush1.bf16.msra.mxu0 0
      %1211 = vmatprep.subr.bf16.mxu0 0
      %1212 = vmatpush1.bf16.msra.mxu0 0
      %1213 = vmatprep.subr.bf16.mxu0 0
      %1214 = vmatpush1.bf16.msra.mxu0 0
      %1215 = vmatprep.subr.bf16.mxu0 0
      %1216 = vmatpush1.bf16.msra.mxu0 0
      %1217 = vmatprep.mubr.bf16.mxu0 0
      %1218 = vmatmul.mubr.bf16.gmra.mrb[0].mxu0 %v1174
      %v1219 = vpop.f32.mrb[0].mxu0
      %v1220 = vadd.f32 %v1108, %v1219
      %v1221 = vpop.f32.mrb[0].mxu0
      %v1222 = vpop.f32.mrb[0].mxu0
      %v1223 = vadd.f32 %v1113, %v1222
      %v1224 = vpop.f32.mrb[0].mxu0
      %1225 = vmatprep.mubr.bf16.mxu0 0
      %1226 = vmatmul.mubr.bf16.gmra.mrb[0].mxu0 %v1177
      %v1227 = vpop.f32.mrb[0].mxu0
      %v1228 = vadd.f32 %v1118, %v1227
      %v1229 = vpop.f32.mrb[0].mxu0
      %v1230 = vpop.f32.mrb[0].mxu0
      %v1231 = vadd.f32 %v1123, %v1230
      %v1232 = vpop.f32.mrb[0].mxu0
      %1233 = vmatprep.mubr.bf16.mxu0 0
      %1234 = vmatmul.mubr.bf16.gmra.mrb[0].mxu0 %v1180
      %v1235 = vpop.f32.mrb[0].mxu0
      %v1236 = vadd.f32 %v1128, %v1235
      %v1237 = vpop.f32.mrb[0].mxu0
      %v1238 = vpop.f32.mrb[0].mxu0
      %v1239 = vadd.f32 %v1133, %v1238
      %v1240 = vpop.f32.mrb[0].mxu0
      %1241 = vmatprep.mubr.bf16.mxu0 0
      %1242 = vmatmul.mubr.bf16.gmra.mrb[0].mxu0 %v1183
      %v1243 = vpop.f32.mrb[0].mxu0
      %v1244 = vadd.f32 %v1138, %v1243
      %v1245 = vpop.f32.mrb[0].mxu0
      %v1246 = vpop.f32.mrb[0].mxu0
      %v1247 = vadd.f32 %v1143, %v1246
      %v1248 = vpop.f32.mrb[0].mxu0
      %1249 = vdwg.mxu0
      %v1250 = vmul.f32 %v1220, %v452
      %v1251 = vmul.f32 %v1223, %v452
      %v1252 = vmul.f32 %v1228, %v452
      %v1253 = vmul.f32 %v1231, %v452
      %v1254 = vmul.f32 %v1236, %v452
      %v1255 = vmul.f32 %v1239, %v452
      %v1256 = vmul.f32 %v1244, %v452
      %v1257 = vmul.f32 %v1247, %v452
      %vm1258 = vcmask 130048
      %1259 = vst.msk [vmem:[%s428] sm:$0xff] %vm1258, %v1250
      %1260 = vst.msk [vmem:[%s428 + $0x8] sm:$0xff] %vm1258, %v1251
      %1261 = vst.msk [vmem:[%s428 + $0x10] sm:$0xff] %vm1258, %v1252
      %1262 = vst.msk [vmem:[%s428 + $0x18] sm:$0xff] %vm1258, %v1253
      %1263 = vst.msk [vmem:[%s433] sm:$0xff] %vm1258, %v1254
      %1264 = vst.msk [vmem:[%s433 + $0x8] sm:$0xff] %vm1258, %v1255
      %1265 = vst.msk [vmem:[%s433 + $0x10] sm:$0xff] %vm1258, %v1256
      %1266 = vst.msk [vmem:[%s433 + $0x18] sm:$0xff] %vm1258, %v1257
      %p1267 = scmp.lt.s32.totalorder %s31, 1
      %s1268 = scalar_select %p1267, %s31, 1
      %s1269 = smul.addr %s1268, 4
      %s1270 = smul.addr %s1269, 8
      %s1271 = scalar_lea.vmem %s12, %s1270
      %p1272 = scmp.lt.s32.totalorder %s31, 1
      %s1273 = scalar_select %p1272, %s31, 1
      %s1274 = smul.addr %s1273, 4
      %s1275 = smul.addr %s1274, 8
      %s1276 = scalar_lea.vmem %s13, %s1275
      // Predicated region
      $region65: #{tpu_custom_call.1} parent=63 // pred_check
        %p1277 = pneg %p285
      $region66: #{tpu_custom_call.1} parent=63 // pred_check_branch
        %1279 = sbr.rel (%p1277) target = $region68
      $region67: #{tpu_custom_call.1} parent=63 // pred_region
        _
      $region68: #{tpu_custom_call.1} parent=63 // pred_fallthru
        _
      // Predicated region
      $region69: #{tpu_custom_call.1} parent=63 // pred_check
        %p1280 = pneg %p311
      $region70: #{tpu_custom_call.1} parent=63 // pred_check_branch
        %1282 = sbr.rel (%p1280) target = $region72
      $region71: #{tpu_custom_call.1} parent=63 // pred_region
        _
      $region72: #{tpu_custom_call.1} parent=63 // pred_fallthru
        _
    $region64: #{tpu_custom_call.1} parent=5 // pred_fallthru
      _
    %p1283 = scmp.le.s32.totalorder 2, %s26
    // Predicated region
    $region73: #{tpu_custom_call.1} parent=5 // pred_check
      %p1284 = pneg %p1283
    $region74: #{tpu_custom_call.1} parent=5 // pred_check_branch
      %1286 = sbr.rel (%p1284) target = $region76
    $region75: #{tpu_custom_call.1} parent=5 // pred_region
      %s1287 = ssub.s32 %s26, 2
      // Predicated region
      $region77: #{tpu_custom_call.1} parent=75 // pred_check
        %p1288 = pneg %p291
      $region78: #{tpu_custom_call.1} parent=75 // pred_check_branch
        %1290 = sbr.rel (%p1288) target = $region80
      $region79: #{tpu_custom_call.1} parent=75 // pred_region
        %p1291 = scmp.lt.s32.totalorder %s32, 1
        %s1292 = scalar_select %p1291, %s32, 1
        %s1293 = smul.addr %s1292, 4
        %s1294 = smul.addr %s1293, 8
        %s1295 = scalar_lea.vmem %s12, %s1294
      $region80: #{tpu_custom_call.1} parent=75 // pred_fallthru
        _
      // Predicated region
      $region81: #{tpu_custom_call.1} parent=75 // pred_check
        %p1296 = pneg %p317
      $region82: #{tpu_custom_call.1} parent=75 // pred_check_branch
        %1298 = sbr.rel (%p1296) target = $region84
      $region83: #{tpu_custom_call.1} parent=75 // pred_region
        %p1299 = scmp.lt.s32.totalorder %s32, 1
        %s1300 = scalar_select %p1299, %s32, 1
        %s1301 = smul.addr %s1300, 4
        %s1302 = smul.addr %s1301, 8
        %s1303 = scalar_lea.vmem %s13, %s1302
      $region84: #{tpu_custom_call.1} parent=75 // pred_fallthru
        _
    $region76: #{tpu_custom_call.1} parent=5 // pred_fallthru
      _
  $region6: #{tpu_custom_call.1} parent=0 // loop_footer
    %s30 = sadd.s32 1, %s26
  $region7: #{tpu_custom_call.1} parent=0 // loop_footer_branch
    %25 = sbr.rel target = $region3
  $region8: #{tpu_custom_call.1} parent=0 // loop_exit
    _

</llo_original>
